<compile_context>
chip_gen: v5e
topology: v5e:2x2
jax: 0.10.0
libtpu: 0.0.40
codegen_flags: <defaults>
</compile_context>

<pallas_src>
import math
import functools

import jax
import jax.numpy as jnp
from jax import lax
from jax.experimental import pallas as pl
from jax.experimental.pallas import tpu as pltpu


def _exoma_kernel(hs_ref, wrms1_ref, wb12_ref, convw_ref, wzq_ref, wg1_ref,
                  bg1_ref, wtail_ref, wrms2_ref, fffX_ref, fffY_ref, out_ref,
                  *, L, conv_k, depth, eps):
    x = hs_ref[...].astype(jnp.float32)                    # (TM, D)
    TM, D = x.shape
    IH = wg1_ref.shape[0]
    nodes = fffX_ref.shape[0]

    # ---- input RMSNorm (add_unit_offset=True) ----
    ms = jnp.mean(x * x, axis=-1, keepdims=True)
    xn = x * lax.rsqrt(ms + eps) * (1.0 + wrms1_ref[...].astype(jnp.float32))
    xn_bf = xn.astype(jnp.bfloat16)

    # ---- fused branch projections: [W_b1 | W_b2], one lane-dense MXU matmul ----
    u12 = jnp.dot(xn_bf, wb12_ref[...], preferred_element_type=jnp.float32)  # (TM, 2*IH)
    u1 = u12[:, :IH]
    u2 = u12[:, IH:]

    # branch_one: exact (erf) GELU
    branch_one = 0.5 * u1 * (1.0 + lax.erf(u1 * (1.0 / math.sqrt(2.0))))

    # ---- branch_second: causal depthwise conv (per-sequence, zero-padded) ----
    # out[t] = sum_s w[K-1-s] * u[t-s].  Tiles are sequence-aligned, so a
    # within-tile sublane roll + local-position mask is exact (wrapped /
    # cross-sequence rows are masked out).
    li = lax.broadcasted_iota(jnp.int32, (TM, 1), 0) % L    # position inside its sequence
    convw = convw_ref[...].astype(jnp.float32)              # (K, IH)
    conv = u2 * convw[conv_k - 1:conv_k, :]
    for s in range(1, conv_k):
        if TM % 8 == 0:
            shifted = pltpu.roll(u2, shift=s, axis=0)       # XLU sublane rotate
        else:  # trace-time fallback for non-8-aligned monolithic tiles
            shifted = jnp.concatenate(
                [jnp.zeros((s, IH), u2.dtype), u2[:TM - s, :]], axis=0)
        shifted = jnp.where(li >= s, shifted, 0.0)
        conv = conv + shifted * convw[conv_k - 1 - s:conv_k - s, :]

    # ---- LRUCell (second input = zeros); first output h1 is used ----
    # Fused z0/q gate projection: [W_z0 | W_q], one MXU matmul.
    c = conv
    c_bf = c.astype(jnp.bfloat16)
    zq = jax.nn.sigmoid(jnp.dot(c_bf, wzq_ref[...], preferred_element_type=jnp.float32))
    z0 = zq[:, :IH]
    q = zq[:, IH:]
    cq_bf = (c * q).astype(jnp.bfloat16)
    h1_cap = jnp.tanh(jnp.dot(cq_bf, wg1_ref[...], preferred_element_type=jnp.float32)
                      + bg1_ref[...].astype(jnp.float32))
    branch_second = z0 * h1_cap + (1.0 - z0) * c

    # ---- tail projection + residual ----
    mixed = (branch_second * branch_one).astype(jnp.bfloat16)
    h = x + jnp.dot(mixed, wtail_ref[...], preferred_element_type=jnp.float32)

    # ---- feed_forward: RMSNorm -> FastFeedForward ----
    ms2 = jnp.mean(h * h, axis=-1, keepdims=True)
    f = h * lax.rsqrt(ms2 + eps) * (1.0 + wrms2_ref[...].astype(jnp.float32))
    f_bf = f.astype(jnp.bfloat16)

    # lambda for every tree node in one MXU matmul: (TM, nodes)
    lam_all = lax.dot_general(f_bf, fffX_ref[...], (((1,), (1,)), ((), ())),
                              preferred_element_type=jnp.float32)
    node = jnp.zeros((TM, 1), jnp.int32)                    # global node index
    coef = jnp.zeros((TM, nodes), jnp.float32)              # per-node coefficient matrix
    iota_nodes = lax.broadcasted_iota(jnp.int32, (TM, nodes), 1)
    for _ in range(depth):                                   # pure VPU/XLU tree walk
        onehot = node == iota_nodes                          # (TM, nodes) exact select
        lam = jnp.sum(jnp.where(onehot, lam_all, 0.0), axis=-1, keepdims=True)
        coef = coef + jnp.where(onehot, lam, 0.0)
        node = node * 2 + 1 + (lam > 0).astype(jnp.int32)    # matches PyTorch (λ > 0)
    # y = sum_l lam_l * Y[node_l] as one big MXU matmul
    y = jnp.dot(coef.astype(jnp.bfloat16), fffY_ref[...],
                preferred_element_type=jnp.float32)          # (TM, D)

    out_ref[...] = (h + y).astype(out_ref.dtype)


def _choose_seqs_per_tile(B, L, target_rows):
    """Largest sequence-aligned, 8-row-aligned tile (in sequences) <= target."""
    candidates = [s for s in range(1, B + 1)
                  if B % s == 0 and (s * L) % 8 == 0]
    if not candidates:
        return B                                             # monolithic fallback
    fitting = [s for s in candidates if s * L <= target_rows]
    return max(fitting) if fitting else min(candidates)


def exoma_recurrent_decoder(hidden_states, kv_write_indices, kv_cache, mask, params,
                            *, eps=1e-6, conv_k=4, tile_target_rows=1024):
    # kv_write_indices / kv_cache / mask are accepted for interface parity with
    # the PyTorch forward, which also never uses them.
    del kv_write_indices, kv_cache, mask
    B, L, D = hidden_states.shape
    N = B * L
    IH = params["wg1"].shape[0]
    nodes = params["fff_X"].shape[0]
    depth = int(math.floor(math.log2(D)))
    assert nodes == 2 ** depth - 1
    assert conv_k >= 1

    seqs_per_tile = _choose_seqs_per_tile(B, L, tile_target_rows)
    TM = seqs_per_tile * L
    num_tiles = N // TM

    hs2d = hidden_states.reshape(N, D).astype(jnp.float32)

    kernel = functools.partial(_exoma_kernel, L=L, conv_k=conv_k,
                               depth=depth, eps=eps)

    const = lambda i: (0, 0)
    out2d = pl.pallas_call(
        kernel,
        out_shape=jax.ShapeDtypeStruct((N, D), jnp.float32),
        grid=(num_tiles,),
        in_specs=[
            pl.BlockSpec((TM, D), lambda i: (i, 0)),         # hidden_states tile
            pl.BlockSpec((1, D), const),                     # rms1_w
            pl.BlockSpec((D, 2 * IH), const),                # [W_b1 | W_b2]^T
            pl.BlockSpec((conv_k, IH), const),               # conv weights
            pl.BlockSpec((IH, 2 * IH), const),               # [W_z0 | W_q]^T
            pl.BlockSpec((IH, IH), const),                   # wg1
            pl.BlockSpec((1, IH), const),                    # bg1
            pl.BlockSpec((IH, D), const),                    # wtail_t
            pl.BlockSpec((1, D), const),                     # rms2_w
            pl.BlockSpec((nodes, D), const),                 # fff_X
            pl.BlockSpec((nodes, D), const),                 # fff_Y
        ],
        out_specs=pl.BlockSpec((TM, D), lambda i: (i, 0)),
        compiler_params=pltpu.CompilerParams(
            dimension_semantics=("parallel",),               # legal: tiles are seq-aligned
            vmem_limit_bytes=48 * 1024 * 1024,               # fits v7x 64 MiB budget
        ),
    )(hs2d,
      params["rms1_w"], params["wb12_t"], params["convw_t"], params["wzq"],
      params["wg1"], params["bg1"], params["wtail_t"], params["rms2_w"],
      params["fff_X"], params["fff_Y"])
    return out2d.reshape(B, L, D)


def _exoma_reference(hidden_states, params, *, eps=1e-6, conv_k=4):
    """Pure-JAX reference that mirrors the kernel math (same bf16 cast points)."""
    B, L, D = hidden_states.shape
    N = B * L
    IH = params["wg1"].shape[0]
    depth = int(math.floor(math.log2(D)))

    x = hidden_states.reshape(N, D).astype(jnp.float32)
    ms = jnp.mean(x * x, axis=-1, keepdims=True)
    xn = x * lax.rsqrt(ms + eps) * (1.0 + params["rms1_w"])
    xn_bf = xn.astype(jnp.bfloat16)

    u12 = jnp.dot(xn_bf, params["wb12_t"], preferred_element_type=jnp.float32)
    u1, u2 = u12[:, :IH], u12[:, IH:]
    branch_one = 0.5 * u1 * (1.0 + lax.erf(u1 * (1.0 / math.sqrt(2.0))))

    convw = params["convw_t"]                                # (K, IH)
    u2s = u2.reshape(B, L, IH)
    conv = u2s * convw[conv_k - 1]
    for s in range(1, conv_k):
        shifted = jnp.pad(u2s, ((0, 0), (s, 0), (0, 0)))[:, :L, :]
        conv = conv + shifted * convw[conv_k - 1 - s]
    c = conv.reshape(N, IH)

    c_bf = c.astype(jnp.bfloat16)
    zq = jax.nn.sigmoid(jnp.dot(c_bf, params["wzq"], preferred_element_type=jnp.float32))
    z0, q = zq[:, :IH], zq[:, IH:]
    cq_bf = (c * q).astype(jnp.bfloat16)
    h1_cap = jnp.tanh(jnp.dot(cq_bf, params["wg1"], preferred_element_type=jnp.float32)
                      + params["bg1"])
    branch_second = z0 * h1_cap + (1.0 - z0) * c

    mixed = (branch_second * branch_one).astype(jnp.bfloat16)
    h = x + jnp.dot(mixed, params["wtail_t"], preferred_element_type=jnp.float32)

    ms2 = jnp.mean(h * h, axis=-1, keepdims=True)
    f = h * lax.rsqrt(ms2 + eps) * (1.0 + params["rms2_w"])
    f_bf = f.astype(jnp.bfloat16)

    lam_all = jnp.dot(f_bf, params["fff_X"].T, preferred_element_type=jnp.float32)
    node = jnp.zeros((N,), jnp.int32)
    y = jnp.zeros((N, D), jnp.float32)
    for _ in range(depth):
        lam = jnp.take_along_axis(lam_all, node[:, None], axis=1)        # (N, 1)
        ysel = params["fff_Y"][node].astype(jnp.float32)                 # (N, D)
        y = y + lam.astype(jnp.bfloat16).astype(jnp.float32) * ysel
        node = node * 2 + 1 + (lam[:, 0] > 0).astype(jnp.int32)
    return (h + y).reshape(B, L, D)


def init_params(key, dim, inner_dim, conv_k):
    depth = int(math.floor(math.log2(dim)))
    nodes = 2 ** depth - 1
    ks = jax.random.split(key, 9)
    u = lambda k, shape, s: jax.random.uniform(k, shape, jnp.float32, minval=-s, maxval=s)

    s_lin = 1.0 / math.sqrt(dim)
    W_b1 = u(ks[0], (inner_dim, dim), s_lin)                 # nn.Linear weight (out, in)
    W_b2 = u(ks[1], (inner_dim, dim), s_lin)
    W_conv = u(ks[2], (inner_dim, conv_k), 1.0 / math.sqrt(conv_k))  # depthwise (C,1,K)->(C,K)

    s_lru = 1.0 / math.sqrt(inner_dim)
    W_lin = u(ks[3], (4 * inner_dim, 2 * inner_dim), s_lru)  # LRU lin (bias=False)
    W_g1 = u(ks[4], (inner_dim, 2 * inner_dim), s_lru)       # LRU gate1
    b_g1 = u(ks[5], (inner_dim,), s_lru)

    W_tail = u(ks[6], (dim, inner_dim), 1.0 / math.sqrt(inner_dim))

    X = jax.random.normal(ks[7], (nodes, dim), jnp.float32)  # hyperspherical-shell init
    X = X / jnp.linalg.norm(X, axis=-1, keepdims=True)
    Y = jax.random.normal(ks[8], (nodes, dim), jnp.float32)
    Y = Y / jnp.linalg.norm(Y, axis=-1, keepdims=True)

    H = inner_dim
    bf = jnp.bfloat16
    # Second LRU input is identically zero, so only these weight slices act.
    wb12 = jnp.concatenate([W_b1.T, W_b2.T], axis=1)                       # (D, 2*IH)
    wzq = jnp.concatenate([W_lin[0:H, 0:H].T, W_lin[3 * H:4 * H, 0:H].T],
                          axis=1)                                          # (IH, 2*IH)
    return {
        "rms1_w": jnp.zeros((1, dim), jnp.float32),          # RMSNorm weights init to 0
        "rms2_w": jnp.zeros((1, dim), jnp.float32),
        "wb12_t": wb12.astype(bf),                           # fused branch projections
        "convw_t": W_conv.T,                                 # (K, IH) f32 (VPU elementwise)
        "wzq": wzq.astype(bf),                               # fused z0/q gates
        "wg1": W_g1[:, H:2 * H].T.astype(bf),                # gate1 half acting on x*q
        "bg1": b_g1.reshape(1, H),
        "wtail_t": W_tail.T.astype(bf),                      # (IH, D)
        "fff_X": X.astype(bf),
        "fff_Y": Y.astype(bf),
    }


if __name__ == "__main__":
    dim, expand_factor = 32, 2
    inner_dim = expand_factor * dim
    B, L = 2, 8
    conv_k = 4

    key = jax.random.PRNGKey(0)
    k_hs, k_p = jax.random.split(key)
    hidden_states = jax.random.normal(k_hs, (B, L, dim), jnp.float32)
    params = init_params(k_p, dim, inner_dim, conv_k)

    # forward-signature parity arguments (unused by the PyTorch forward too)
    kv_write_indices = jnp.arange(L, dtype=jnp.int32)
    kv_cache = (jnp.zeros((B, L, dim), jnp.float32),
                jnp.zeros((B, L, dim), jnp.float32))
    mask = jnp.zeros((1, 1, L, L), jnp.float32)

    ref = _exoma_reference(hidden_states, params, eps=1e-6, conv_k=conv_k)

    # tile_target_rows=8 -> one sequence per tile, grid=(2,): exercises the
    # tiled, sequence-aligned pipeline path on the small demo shapes.
    out_tiled = exoma_recurrent_decoder(hidden_states, kv_write_indices, kv_cache,
                                        mask, params, eps=1e-6, conv_k=conv_k,
                                        tile_target_rows=8)
    # default tiling -> both sequences in one (16, D) tile: exercises the
    # wrap/cross-sequence masking of the causal conv roll.
    out_mono = exoma_recurrent_decoder(hidden_states, kv_write_indices, kv_cache,
                                       mask, params, eps=1e-6, conv_k=conv_k)
    jax.block_until_ready((out_tiled, out_mono))

    assert out_tiled.shape == (B, L, dim) and out_tiled.dtype == jnp.float32
    err_t = float(jnp.max(jnp.abs(out_tiled - ref)))
    err_m = float(jnp.max(jnp.abs(out_mono - ref)))
    assert err_t < 5e-2, f"tiled kernel mismatch vs reference: {err_t}"
    assert err_m < 5e-2, f"monolithic kernel mismatch vs reference: {err_m}"
    print("KERNEL_OK")
</pallas_src>

<mosaic_0001>
module attributes {stable_mosaic.version = 11 : i64} {
  func.func @_exoma_kernel(%arg0: i32, %arg1: memref<8x32xf32, #tpu.memory_space<vmem>>, %arg2: memref<1x32xf32, #tpu.memory_space<vmem>>, %arg3: memref<32x128xbf16, #tpu.memory_space<vmem>>, %arg4: memref<4x64xf32, #tpu.memory_space<vmem>>, %arg5: memref<64x128xbf16, #tpu.memory_space<vmem>>, %arg6: memref<64x64xbf16, #tpu.memory_space<vmem>>, %arg7: memref<1x64xf32, #tpu.memory_space<vmem>>, %arg8: memref<64x32xbf16, #tpu.memory_space<vmem>>, %arg9: memref<1x32xf32, #tpu.memory_space<vmem>>, %arg10: memref<31x32xbf16, #tpu.memory_space<vmem>>, %arg11: memref<31x32xbf16, #tpu.memory_space<vmem>>, %arg12: memref<8x32xf32, #tpu.memory_space<vmem>>) attributes {dimension_semantics = [#tpu.dimension_semantics<parallel>], iteration_bounds = array<i64: 2>, scalar_prefetch = 0 : i64, scratch_operands = 0 : i64, tpu.core_type = #tpu.core_type<tc>, window_params = [{transform_indices = @transform_0, window_bounds = array<i64: 8, 32>}, {pipeline_mode = #tpu.pipeline_mode<synchronous>, transform_indices = @transform_1, window_bounds = array<i64: 1, 32>}, {pipeline_mode = #tpu.pipeline_mode<synchronous>, transform_indices = @transform_2, window_bounds = array<i64: 32, 128>}, {pipeline_mode = #tpu.pipeline_mode<synchronous>, transform_indices = @transform_3, window_bounds = array<i64: 4, 64>}, {pipeline_mode = #tpu.pipeline_mode<synchronous>, transform_indices = @transform_4, window_bounds = array<i64: 64, 128>}, {pipeline_mode = #tpu.pipeline_mode<synchronous>, transform_indices = @transform_5, window_bounds = array<i64: 64, 64>}, {pipeline_mode = #tpu.pipeline_mode<synchronous>, transform_indices = @transform_6, window_bounds = array<i64: 1, 64>}, {pipeline_mode = #tpu.pipeline_mode<synchronous>, transform_indices = @transform_7, window_bounds = array<i64: 64, 32>}, {pipeline_mode = #tpu.pipeline_mode<synchronous>, transform_indices = @transform_8, window_bounds = array<i64: 1, 32>}, {pipeline_mode = #tpu.pipeline_mode<synchronous>, transform_indices = @transform_9, window_bounds = array<i64: 31, 32>}, {pipeline_mode = #tpu.pipeline_mode<synchronous>, transform_indices = @transform_10, window_bounds = array<i64: 31, 32>}, {transform_indices = @transform_11, window_bounds = array<i64: 8, 32>}]} {
    %c0 = arith.constant 0 : index
    %c0_0 = arith.constant 0 : index
    %0 = vector.load %arg1[%c0, %c0_0] : memref<8x32xf32, #tpu.memory_space<vmem>>, vector<8x32xf32>
    %1 = arith.mulf %0, %0 : vector<8x32xf32>
    %cst = arith.constant dense<0.000000e+00> : vector<8xf32>
    %2 = vector.multi_reduction <add>, %1, %cst [1] : vector<8x32xf32> to vector<8xf32>
    %3 = vector.shape_cast %2 : vector<8xf32> to vector<8x1xf32>
    %cst_1 = arith.constant 3.200000e+01 : f32
    %4 = vector.broadcast %cst_1 : f32 to vector<8x1xf32>
    %5 = arith.divf %3, %4 : vector<8x1xf32>
    %cst_2 = arith.constant 9.99999997E-7 : f32
    %6 = vector.broadcast %cst_2 : f32 to vector<8x1xf32>
    %7 = arith.addf %5, %6 : vector<8x1xf32>
    %8 = math.rsqrt %7 : vector<8x1xf32>
    %9 = vector.broadcast %8 : vector<8x1xf32> to vector<8x32xf32>
    %10 = arith.mulf %0, %9 : vector<8x32xf32>
    %c0_3 = arith.constant 0 : index
    %c0_4 = arith.constant 0 : index
    %11 = vector.load %arg2[%c0_3, %c0_4] : memref<1x32xf32, #tpu.memory_space<vmem>>, vector<1x32xf32>
    %cst_5 = arith.constant 1.000000e+00 : f32
    %12 = vector.broadcast %cst_5 : f32 to vector<1x32xf32>
    %13 = arith.addf %12, %11 : vector<1x32xf32>
    %14 = vector.broadcast %13 : vector<1x32xf32> to vector<8x32xf32>
    %15 = arith.mulf %10, %14 : vector<8x32xf32>
    %16 = arith.truncf %15 : vector<8x32xf32> to vector<8x32xbf16>
    %c0_6 = arith.constant 0 : index
    %c0_7 = arith.constant 0 : index
    %17 = vector.load %arg3[%c0_6, %c0_7] : memref<32x128xbf16, #tpu.memory_space<vmem>>, vector<32x128xbf16>
    %cst_8 = arith.constant dense<0.000000e+00> : vector<8x128xf32>
    %18 = tpu.matmul %16, %17, %cst_8 {dimension_numbers = #tpu.dot_dimension_numbers<[1], [0], [0], [1], [0, 0, 1, 1], [], []>} : vector<8x32xbf16>, vector<32x128xbf16>, vector<8x128xf32> -> vector<8x128xf32>
    %19 = vector.extract_strided_slice %18 {offsets = [0, 0], sizes = [8, 64], strides = [1, 1]} : vector<8x128xf32> to vector<8x64xf32>
    %20 = vector.extract_strided_slice %18 {offsets = [0, 64], sizes = [8, 64], strides = [1, 1]} : vector<8x128xf32> to vector<8x64xf32>
    %cst_9 = arith.constant 5.000000e-01 : f32
    %21 = vector.broadcast %cst_9 : f32 to vector<8x64xf32>
    %22 = arith.mulf %21, %19 : vector<8x64xf32>
    %cst_10 = arith.constant 0.707106769 : f32
    %23 = vector.broadcast %cst_10 : f32 to vector<8x64xf32>
    %24 = arith.mulf %19, %23 : vector<8x64xf32>
    %25 = math.erf %24 : vector<8x64xf32>
    %cst_11 = arith.constant 1.000000e+00 : f32
    %26 = vector.broadcast %cst_11 : f32 to vector<8x64xf32>
    %27 = arith.addf %26, %25 : vector<8x64xf32>
    %28 = arith.mulf %22, %27 : vector<8x64xf32>
    %29 = tpu.iota {dimensions = array<i32: 0>} : vector<8x1xi32>
    %c8_i32 = arith.constant 8 : i32
    %c0_i32 = arith.constant 0 : i32
    %30 = arith.cmpi eq, %c8_i32, %c0_i32 : i32
    %c1_i32 = arith.constant 1 : i32
    %31 = arith.select %30, %c1_i32, %c8_i32 : i32
    %32 = vector.broadcast %31 : i32 to vector<8x1xi32>
    %33 = arith.remsi %29, %32 : vector<8x1xi32>
    %c0_i32_12 = arith.constant 0 : i32
    %34 = vector.broadcast %c0_i32_12 : i32 to vector<8x1xi32>
    %35 = arith.cmpi ne, %33, %34 : vector<8x1xi32>
    %c0_i32_13 = arith.constant 0 : i32
    %36 = vector.broadcast %c0_i32_13 : i32 to vector<8x1xi32>
    %37 = arith.cmpi slt, %33, %36 : vector<8x1xi32>
    %c0_i32_14 = arith.constant 0 : i32
    %38 = arith.cmpi slt, %31, %c0_i32_14 : i32
    %39 = vector.broadcast %38 : i1 to vector<8x1xi1>
    %40 = vector.broadcast %39 : vector<8x1xi1> to vector<8x1xi1>
    %41 = arith.xori %37, %40 : vector<8x1xi1>
    %42 = arith.andi %41, %35 : vector<8x1xi1>
    %43 = vector.broadcast %31 : i32 to vector<8x1xi32>
    %44 = arith.addi %33, %43 : vector<8x1xi32>
    %45 = arith.select %42, %44, %33 : vector<8x1xi1>, vector<8x1xi32>
    %c0_15 = arith.constant 0 : index
    %c0_16 = arith.constant 0 : index
    %46 = vector.load %arg4[%c0_15, %c0_16] : memref<4x64xf32, #tpu.memory_space<vmem>>, vector<4x64xf32>
    %47 = vector.extract_strided_slice %46 {offsets = [3, 0], sizes = [1, 64], strides = [1, 1]} : vector<4x64xf32> to vector<1x64xf32>
    %48 = vector.broadcast %47 : vector<1x64xf32> to vector<8x64xf32>
    %49 = arith.mulf %20, %48 : vector<8x64xf32>
    %c1_i32_17 = arith.constant 1 : i32
    %50 = tpu.dynamic_rotate %20 by %c1_i32_17 dim 0 : vector<8x64xf32>, i32 -> vector<8x64xf32>
    %c1_i32_18 = arith.constant 1 : i32
    %51 = vector.broadcast %c1_i32_18 : i32 to vector<8x1xi32>
    %52 = arith.cmpi sge, %45, %51 : vector<8x1xi32>
    %cst_19 = arith.constant 0.000000e+00 : f32
    %53 = vector.shape_cast %52 : vector<8x1xi1> to vector<8x1xi1>
    %54 = vector.broadcast %53 : vector<8x1xi1> to vector<8x64xi1>
    %55 = vector.broadcast %cst_19 : f32 to vector<8x64xf32>
    %56 = arith.select %54, %50, %55 : vector<8x64xi1>, vector<8x64xf32>
    %57 = vector.extract_strided_slice %46 {offsets = [2, 0], sizes = [1, 64], strides = [1, 1]} : vector<4x64xf32> to vector<1x64xf32>
    %58 = vector.broadcast %57 : vector<1x64xf32> to vector<8x64xf32>
    %59 = arith.mulf %56, %58 : vector<8x64xf32>
    %60 = arith.addf %49, %59 : vector<8x64xf32>
    %c2_i32 = arith.constant 2 : i32
    %61 = tpu.dynamic_rotate %20 by %c2_i32 dim 0 : vector<8x64xf32>, i32 -> vector<8x64xf32>
    %c2_i32_20 = arith.constant 2 : i32
    %62 = vector.broadcast %c2_i32_20 : i32 to vector<8x1xi32>
    %63 = arith.cmpi sge, %45, %62 : vector<8x1xi32>
    %cst_21 = arith.constant 0.000000e+00 : f32
    %64 = vector.shape_cast %63 : vector<8x1xi1> to vector<8x1xi1>
    %65 = vector.broadcast %64 : vector<8x1xi1> to vector<8x64xi1>
    %66 = vector.broadcast %cst_21 : f32 to vector<8x64xf32>
    %67 = arith.select %65, %61, %66 : vector<8x64xi1>, vector<8x64xf32>
    %68 = vector.extract_strided_slice %46 {offsets = [1, 0], sizes = [1, 64], strides = [1, 1]} : vector<4x64xf32> to vector<1x64xf32>
    %69 = vector.broadcast %68 : vector<1x64xf32> to vector<8x64xf32>
    %70 = arith.mulf %67, %69 : vector<8x64xf32>
    %71 = arith.addf %60, %70 : vector<8x64xf32>
    %c3_i32 = arith.constant 3 : i32
    %72 = tpu.dynamic_rotate %20 by %c3_i32 dim 0 : vector<8x64xf32>, i32 -> vector<8x64xf32>
    %c3_i32_22 = arith.constant 3 : i32
    %73 = vector.broadcast %c3_i32_22 : i32 to vector<8x1xi32>
    %74 = arith.cmpi sge, %45, %73 : vector<8x1xi32>
    %cst_23 = arith.constant 0.000000e+00 : f32
    %75 = vector.shape_cast %74 : vector<8x1xi1> to vector<8x1xi1>
    %76 = vector.broadcast %75 : vector<8x1xi1> to vector<8x64xi1>
    %77 = vector.broadcast %cst_23 : f32 to vector<8x64xf32>
    %78 = arith.select %76, %72, %77 : vector<8x64xi1>, vector<8x64xf32>
    %79 = vector.extract_strided_slice %46 {offsets = [0, 0], sizes = [1, 64], strides = [1, 1]} : vector<4x64xf32> to vector<1x64xf32>
    %80 = vector.broadcast %79 : vector<1x64xf32> to vector<8x64xf32>
    %81 = arith.mulf %78, %80 : vector<8x64xf32>
    %82 = arith.addf %71, %81 : vector<8x64xf32>
    %83 = arith.truncf %82 : vector<8x64xf32> to vector<8x64xbf16>
    %c0_24 = arith.constant 0 : index
    %c0_25 = arith.constant 0 : index
    %84 = vector.load %arg5[%c0_24, %c0_25] : memref<64x128xbf16, #tpu.memory_space<vmem>>, vector<64x128xbf16>
    %cst_26 = arith.constant dense<0.000000e+00> : vector<8x128xf32>
    %85 = tpu.matmul %83, %84, %cst_26 {dimension_numbers = #tpu.dot_dimension_numbers<[1], [0], [0], [1], [0, 0, 1, 1], [], []>} : vector<8x64xbf16>, vector<64x128xbf16>, vector<8x128xf32> -> vector<8x128xf32>
    %86 = arith.negf %85 : vector<8x128xf32>
    %87 = math.exp %86 : vector<8x128xf32>
    %cst_27 = arith.constant 1.000000e+00 : f32
    %88 = vector.broadcast %cst_27 : f32 to vector<8x128xf32>
    %89 = arith.addf %88, %87 : vector<8x128xf32>
    %90 = arith.divf %88, %89 : vector<8x128xf32>
    %91 = vector.extract_strided_slice %90 {offsets = [0, 0], sizes = [8, 64], strides = [1, 1]} : vector<8x128xf32> to vector<8x64xf32>
    %92 = vector.extract_strided_slice %90 {offsets = [0, 64], sizes = [8, 64], strides = [1, 1]} : vector<8x128xf32> to vector<8x64xf32>
    %93 = arith.mulf %82, %92 : vector<8x64xf32>
    %94 = arith.truncf %93 : vector<8x64xf32> to vector<8x64xbf16>
    %c0_28 = arith.constant 0 : index
    %c0_29 = arith.constant 0 : index
    %95 = vector.load %arg6[%c0_28, %c0_29] : memref<64x64xbf16, #tpu.memory_space<vmem>>, vector<64x64xbf16>
    %cst_30 = arith.constant dense<0.000000e+00> : vector<8x64xf32>
    %96 = tpu.matmul %94, %95, %cst_30 {dimension_numbers = #tpu.dot_dimension_numbers<[1], [0], [0], [1], [0, 0, 1, 1], [], []>} : vector<8x64xbf16>, vector<64x64xbf16>, vector<8x64xf32> -> vector<8x64xf32>
    %c0_31 = arith.constant 0 : index
    %c0_32 = arith.constant 0 : index
    %97 = vector.load %arg7[%c0_31, %c0_32] : memref<1x64xf32, #tpu.memory_space<vmem>>, vector<1x64xf32>
    %98 = vector.broadcast %97 : vector<1x64xf32> to vector<8x64xf32>
    %99 = arith.addf %96, %98 : vector<8x64xf32>
    %100 = math.tanh %99 : vector<8x64xf32>
    %101 = arith.mulf %91, %100 : vector<8x64xf32>
    %cst_33 = arith.constant 1.000000e+00 : f32
    %102 = vector.broadcast %cst_33 : f32 to vector<8x64xf32>
    %103 = arith.subf %102, %91 : vector<8x64xf32>
    %104 = arith.mulf %103, %82 : vector<8x64xf32>
    %105 = arith.addf %101, %104 : vector<8x64xf32>
    %106 = arith.mulf %105, %28 : vector<8x64xf32>
    %107 = arith.truncf %106 : vector<8x64xf32> to vector<8x64xbf16>
    %c0_34 = arith.constant 0 : index
    %c0_35 = arith.constant 0 : index
    %108 = vector.load %arg8[%c0_34, %c0_35] : memref<64x32xbf16, #tpu.memory_space<vmem>>, vector<64x32xbf16>
    %cst_36 = arith.constant dense<0.000000e+00> : vector<8x32xf32>
    %109 = tpu.matmul %107, %108, %cst_36 {dimension_numbers = #tpu.dot_dimension_numbers<[1], [0], [0], [1], [0, 0, 1, 1], [], []>} : vector<8x64xbf16>, vector<64x32xbf16>, vector<8x32xf32> -> vector<8x32xf32>
    %110 = arith.addf %0, %109 : vector<8x32xf32>
    %111 = arith.mulf %110, %110 : vector<8x32xf32>
    %cst_37 = arith.constant dense<0.000000e+00> : vector<8xf32>
    %112 = vector.multi_reduction <add>, %111, %cst_37 [1] : vector<8x32xf32> to vector<8xf32>
    %113 = vector.shape_cast %112 : vector<8xf32> to vector<8x1xf32>
    %cst_38 = arith.constant 3.200000e+01 : f32
    %114 = vector.broadcast %cst_38 : f32 to vector<8x1xf32>
    %115 = arith.divf %113, %114 : vector<8x1xf32>
    %cst_39 = arith.constant 9.99999997E-7 : f32
    %116 = vector.broadcast %cst_39 : f32 to vector<8x1xf32>
    %117 = arith.addf %115, %116 : vector<8x1xf32>
    %118 = math.rsqrt %117 : vector<8x1xf32>
    %119 = vector.broadcast %118 : vector<8x1xf32> to vector<8x32xf32>
    %120 = arith.mulf %110, %119 : vector<8x32xf32>
    %c0_40 = arith.constant 0 : index
    %c0_41 = arith.constant 0 : index
    %121 = vector.load %arg9[%c0_40, %c0_41] : memref<1x32xf32, #tpu.memory_space<vmem>>, vector<1x32xf32>
    %cst_42 = arith.constant 1.000000e+00 : f32
    %122 = vector.broadcast %cst_42 : f32 to vector<1x32xf32>
    %123 = arith.addf %122, %121 : vector<1x32xf32>
    %124 = vector.broadcast %123 : vector<1x32xf32> to vector<8x32xf32>
    %125 = arith.mulf %120, %124 : vector<8x32xf32>
    %126 = arith.truncf %125 : vector<8x32xf32> to vector<8x32xbf16>
    %c0_43 = arith.constant 0 : index
    %c0_44 = arith.constant 0 : index
    %127 = vector.load %arg10[%c0_43, %c0_44] : memref<31x32xbf16, #tpu.memory_space<vmem>>, vector<31x32xbf16>
    %cst_45 = arith.constant dense<0.000000e+00> : vector<8x31xf32>
    %128 = tpu.matmul %126, %127, %cst_45 {dimension_numbers = #tpu.dot_dimension_numbers<[1], [1], [0], [0], [0, 0, 1, 0], [], []>} : vector<8x32xbf16>, vector<31x32xbf16>, vector<8x31xf32> -> vector<8x31xf32>
    %c0_i32_46 = arith.constant 0 : i32
    %129 = vector.broadcast %c0_i32_46 : i32 to vector<8x1xi32>
    %cst_47 = arith.constant 0.000000e+00 : f32
    %130 = vector.broadcast %cst_47 : f32 to vector<8x31xf32>
    %131 = tpu.iota {dimensions = array<i32: 1>} : vector<8x31xi32>
    %132 = vector.broadcast %129 : vector<8x1xi32> to vector<8x31xi32>
    %133 = arith.cmpi eq, %132, %131 : vector<8x31xi32>
    %cst_48 = arith.constant 0.000000e+00 : f32
    %134 = vector.broadcast %cst_48 : f32 to vector<8x31xf32>
    %135 = arith.select %133, %128, %134 : vector<8x31xi1>, vector<8x31xf32>
    %cst_49 = arith.constant dense<0.000000e+00> : vector<8xf32>
    %136 = vector.multi_reduction <add>, %135, %cst_49 [1] : vector<8x31xf32> to vector<8xf32>
    %137 = vector.shape_cast %136 : vector<8xf32> to vector<8x1xf32>
    %cst_50 = arith.constant 0.000000e+00 : f32
    %138 = vector.shape_cast %137 : vector<8x1xf32> to vector<8x1xf32>
    %139 = vector.broadcast %138 : vector<8x1xf32> to vector<8x31xf32>
    %140 = vector.broadcast %cst_50 : f32 to vector<8x31xf32>
    %141 = arith.select %133, %139, %140 : vector<8x31xi1>, vector<8x31xf32>
    %142 = arith.addf %130, %141 : vector<8x31xf32>
    %c2_i32_51 = arith.constant 2 : i32
    %143 = vector.broadcast %c2_i32_51 : i32 to vector<8x1xi32>
    %144 = arith.muli %129, %143 : vector<8x1xi32>
    %c1_i32_52 = arith.constant 1 : i32
    %145 = vector.broadcast %c1_i32_52 : i32 to vector<8x1xi32>
    %146 = arith.addi %144, %145 : vector<8x1xi32>
    %cst_53 = arith.constant 0.000000e+00 : f32
    %147 = vector.broadcast %cst_53 : f32 to vector<8x1xf32>
    %148 = arith.cmpf ogt, %137, %147 : vector<8x1xf32>
    %149 = arith.extui %148 : vector<8x1xi1> to vector<8x1xi32>
    %150 = arith.addi %146, %149 : vector<8x1xi32>
    %151 = vector.broadcast %150 : vector<8x1xi32> to vector<8x31xi32>
    %152 = arith.cmpi eq, %151, %131 : vector<8x31xi32>
    %cst_54 = arith.constant 0.000000e+00 : f32
    %153 = vector.broadcast %cst_54 : f32 to vector<8x31xf32>
    %154 = arith.select %152, %128, %153 : vector<8x31xi1>, vector<8x31xf32>
    %cst_55 = arith.constant dense<0.000000e+00> : vector<8xf32>
    %155 = vector.multi_reduction <add>, %154, %cst_55 [1] : vector<8x31xf32> to vector<8xf32>
    %156 = vector.shape_cast %155 : vector<8xf32> to vector<8x1xf32>
    %cst_56 = arith.constant 0.000000e+00 : f32
    %157 = vector.shape_cast %156 : vector<8x1xf32> to vector<8x1xf32>
    %158 = vector.broadcast %157 : vector<8x1xf32> to vector<8x31xf32>
    %159 = vector.broadcast %cst_56 : f32 to vector<8x31xf32>
    %160 = arith.select %152, %158, %159 : vector<8x31xi1>, vector<8x31xf32>
    %161 = arith.addf %142, %160 : vector<8x31xf32>
    %c2_i32_57 = arith.constant 2 : i32
    %162 = vector.broadcast %c2_i32_57 : i32 to vector<8x1xi32>
    %163 = arith.muli %150, %162 : vector<8x1xi32>
    %c1_i32_58 = arith.constant 1 : i32
    %164 = vector.broadcast %c1_i32_58 : i32 to vector<8x1xi32>
    %165 = arith.addi %163, %164 : vector<8x1xi32>
    %cst_59 = arith.constant 0.000000e+00 : f32
    %166 = vector.broadcast %cst_59 : f32 to vector<8x1xf32>
    %167 = arith.cmpf ogt, %156, %166 : vector<8x1xf32>
    %168 = arith.extui %167 : vector<8x1xi1> to vector<8x1xi32>
    %169 = arith.addi %165, %168 : vector<8x1xi32>
    %170 = vector.broadcast %169 : vector<8x1xi32> to vector<8x31xi32>
    %171 = arith.cmpi eq, %170, %131 : vector<8x31xi32>
    %cst_60 = arith.constant 0.000000e+00 : f32
    %172 = vector.broadcast %cst_60 : f32 to vector<8x31xf32>
    %173 = arith.select %171, %128, %172 : vector<8x31xi1>, vector<8x31xf32>
    %cst_61 = arith.constant dense<0.000000e+00> : vector<8xf32>
    %174 = vector.multi_reduction <add>, %173, %cst_61 [1] : vector<8x31xf32> to vector<8xf32>
    %175 = vector.shape_cast %174 : vector<8xf32> to vector<8x1xf32>
    %cst_62 = arith.constant 0.000000e+00 : f32
    %176 = vector.shape_cast %175 : vector<8x1xf32> to vector<8x1xf32>
    %177 = vector.broadcast %176 : vector<8x1xf32> to vector<8x31xf32>
    %178 = vector.broadcast %cst_62 : f32 to vector<8x31xf32>
    %179 = arith.select %171, %177, %178 : vector<8x31xi1>, vector<8x31xf32>
    %180 = arith.addf %161, %179 : vector<8x31xf32>
    %c2_i32_63 = arith.constant 2 : i32
    %181 = vector.broadcast %c2_i32_63 : i32 to vector<8x1xi32>
    %182 = arith.muli %169, %181 : vector<8x1xi32>
    %c1_i32_64 = arith.constant 1 : i32
    %183 = vector.broadcast %c1_i32_64 : i32 to vector<8x1xi32>
    %184 = arith.addi %182, %183 : vector<8x1xi32>
    %cst_65 = arith.constant 0.000000e+00 : f32
    %185 = vector.broadcast %cst_65 : f32 to vector<8x1xf32>
    %186 = arith.cmpf ogt, %175, %185 : vector<8x1xf32>
    %187 = arith.extui %186 : vector<8x1xi1> to vector<8x1xi32>
    %188 = arith.addi %184, %187 : vector<8x1xi32>
    %189 = vector.broadcast %188 : vector<8x1xi32> to vector<8x31xi32>
    %190 = arith.cmpi eq, %189, %131 : vector<8x31xi32>
    %cst_66 = arith.constant 0.000000e+00 : f32
    %191 = vector.broadcast %cst_66 : f32 to vector<8x31xf32>
    %192 = arith.select %190, %128, %191 : vector<8x31xi1>, vector<8x31xf32>
    %cst_67 = arith.constant dense<0.000000e+00> : vector<8xf32>
    %193 = vector.multi_reduction <add>, %192, %cst_67 [1] : vector<8x31xf32> to vector<8xf32>
    %194 = vector.shape_cast %193 : vector<8xf32> to vector<8x1xf32>
    %cst_68 = arith.constant 0.000000e+00 : f32
    %195 = vector.shape_cast %194 : vector<8x1xf32> to vector<8x1xf32>
    %196 = vector.broadcast %195 : vector<8x1xf32> to vector<8x31xf32>
    %197 = vector.broadcast %cst_68 : f32 to vector<8x31xf32>
    %198 = arith.select %190, %196, %197 : vector<8x31xi1>, vector<8x31xf32>
    %199 = arith.addf %180, %198 : vector<8x31xf32>
    %c2_i32_69 = arith.constant 2 : i32
    %200 = vector.broadcast %c2_i32_69 : i32 to vector<8x1xi32>
    %201 = arith.muli %188, %200 : vector<8x1xi32>
    %c1_i32_70 = arith.constant 1 : i32
    %202 = vector.broadcast %c1_i32_70 : i32 to vector<8x1xi32>
    %203 = arith.addi %201, %202 : vector<8x1xi32>
    %cst_71 = arith.constant 0.000000e+00 : f32
    %204 = vector.broadcast %cst_71 : f32 to vector<8x1xf32>
    %205 = arith.cmpf ogt, %194, %204 : vector<8x1xf32>
    %206 = arith.extui %205 : vector<8x1xi1> to vector<8x1xi32>
    %207 = arith.addi %203, %206 : vector<8x1xi32>
    %208 = vector.broadcast %207 : vector<8x1xi32> to vector<8x31xi32>
    %209 = arith.cmpi eq, %208, %131 : vector<8x31xi32>
    %cst_72 = arith.constant 0.000000e+00 : f32
    %210 = vector.broadcast %cst_72 : f32 to vector<8x31xf32>
    %211 = arith.select %209, %128, %210 : vector<8x31xi1>, vector<8x31xf32>
    %cst_73 = arith.constant dense<0.000000e+00> : vector<8xf32>
    %212 = vector.multi_reduction <add>, %211, %cst_73 [1] : vector<8x31xf32> to vector<8xf32>
    %213 = vector.shape_cast %212 : vector<8xf32> to vector<8x1xf32>
    %cst_74 = arith.constant 0.000000e+00 : f32
    %214 = vector.shape_cast %213 : vector<8x1xf32> to vector<8x1xf32>
    %215 = vector.broadcast %214 : vector<8x1xf32> to vector<8x31xf32>
    %216 = vector.broadcast %cst_74 : f32 to vector<8x31xf32>
    %217 = arith.select %209, %215, %216 : vector<8x31xi1>, vector<8x31xf32>
    %218 = arith.addf %199, %217 : vector<8x31xf32>
    %219 = arith.truncf %218 : vector<8x31xf32> to vector<8x31xbf16>
    %c0_75 = arith.constant 0 : index
    %c0_76 = arith.constant 0 : index
    %220 = vector.load %arg11[%c0_75, %c0_76] : memref<31x32xbf16, #tpu.memory_space<vmem>>, vector<31x32xbf16>
    %cst_77 = arith.constant dense<0.000000e+00> : vector<8x32xf32>
    %221 = tpu.matmul %219, %220, %cst_77 {dimension_numbers = #tpu.dot_dimension_numbers<[1], [0], [0], [1], [0, 0, 1, 1], [], []>} : vector<8x31xbf16>, vector<31x32xbf16>, vector<8x32xf32> -> vector<8x32xf32>
    %222 = arith.addf %110, %221 : vector<8x32xf32>
    %c0_78 = arith.constant 0 : index
    %c0_79 = arith.constant 0 : index
    %223 = vector.load %arg12[%c0_78, %c0_79] : memref<8x32xf32, #tpu.memory_space<vmem>>, vector<8x32xf32>
    tpu.vector_store %arg12[%c0_78, %c0_79], %222 {strides = array<i32>} : memref<8x32xf32, #tpu.memory_space<vmem>>, vector<8x32xf32>,
    return
  }
  func.func @transform_0(%arg0: i32) -> (i32, i32) {
    %c0_i32 = arith.constant 0 : i32
    %c0_i32_0 = arith.constant 0 : i32
    return %arg0, %c0_i32 : i32, i32
  }
  func.func @transform_1(%arg0: i32) -> (i32, i32) {
    %c0_i32 = arith.constant 0 : i32
    %c0_i32_0 = arith.constant 0 : i32
    %c0_i32_1 = arith.constant 0 : i32
    return %c0_i32, %c0_i32_0 : i32, i32
  }
  func.func @transform_2(%arg0: i32) -> (i32, i32) {
    %c0_i32 = arith.constant 0 : i32
    %c0_i32_0 = arith.constant 0 : i32
    %c0_i32_1 = arith.constant 0 : i32
    return %c0_i32, %c0_i32_0 : i32, i32
  }
  func.func @transform_3(%arg0: i32) -> (i32, i32) {
    %c0_i32 = arith.constant 0 : i32
    %c0_i32_0 = arith.constant 0 : i32
    %c0_i32_1 = arith.constant 0 : i32
    return %c0_i32, %c0_i32_0 : i32, i32
  }
  func.func @transform_4(%arg0: i32) -> (i32, i32) {
    %c0_i32 = arith.constant 0 : i32
    %c0_i32_0 = arith.constant 0 : i32
    %c0_i32_1 = arith.constant 0 : i32
    return %c0_i32, %c0_i32_0 : i32, i32
  }
  func.func @transform_5(%arg0: i32) -> (i32, i32) {
    %c0_i32 = arith.constant 0 : i32
    %c0_i32_0 = arith.constant 0 : i32
    %c0_i32_1 = arith.constant 0 : i32
    return %c0_i32, %c0_i32_0 : i32, i32
  }
  func.func @transform_6(%arg0: i32) -> (i32, i32) {
    %c0_i32 = arith.constant 0 : i32
    %c0_i32_0 = arith.constant 0 : i32
    %c0_i32_1 = arith.constant 0 : i32
    return %c0_i32, %c0_i32_0 : i32, i32
  }
  func.func @transform_7(%arg0: i32) -> (i32, i32) {
    %c0_i32 = arith.constant 0 : i32
    %c0_i32_0 = arith.constant 0 : i32
    %c0_i32_1 = arith.constant 0 : i32
    return %c0_i32, %c0_i32_0 : i32, i32
  }
  func.func @transform_8(%arg0: i32) -> (i32, i32) {
    %c0_i32 = arith.constant 0 : i32
    %c0_i32_0 = arith.constant 0 : i32
    %c0_i32_1 = arith.constant 0 : i32
    return %c0_i32, %c0_i32_0 : i32, i32
  }
  func.func @transform_9(%arg0: i32) -> (i32, i32) {
    %c0_i32 = arith.constant 0 : i32
    %c0_i32_0 = arith.constant 0 : i32
    %c0_i32_1 = arith.constant 0 : i32
    return %c0_i32, %c0_i32_0 : i32, i32
  }
  func.func @transform_10(%arg0: i32) -> (i32, i32) {
    %c0_i32 = arith.constant 0 : i32
    %c0_i32_0 = arith.constant 0 : i32
    %c0_i32_1 = arith.constant 0 : i32
    return %c0_i32, %c0_i32_0 : i32, i32
  }
  func.func @transform_11(%arg0: i32) -> (i32, i32) {
    %c0_i32 = arith.constant 0 : i32
    %c0_i32_0 = arith.constant 0 : i32
    return %arg0, %c0_i32 : i32, i32
  }
}

</mosaic_0001>

<llo_original>
// kernel: tpu_custom_call.1
$region0: #{tpu_custom_call.1}
  #allocation0 [shape = 'u32[]', space=smem, size = 0x4, offset = 0x4, fixed_abs, tag = 'smem constant byte address 0x4 - core index']
  #allocation1 [shape = 'u32[72,128]{1,0:T(1,128)}', space=vmem, size = 0x9000, scoped, tag = 'internal scratch']
  %s0 = inlined_call_operand.vmem [shape: f32[16,32], index: 0, kind: input, shape index: {}]
  %s1 = inlined_call_operand.vmem [shape: f32[1,32], index: 1, kind: input, shape index: {}]
  %s2 = inlined_call_operand.hbm [shape: bf16[32,128], index: 2, kind: input, shape index: {}]
  %s3 = inlined_call_operand.hbm [shape: f32[4,64], index: 3, kind: input, shape index: {}]
  %s4 = inlined_call_operand.vmem [shape: bf16[64,128], index: 4, kind: input, shape index: {}]
  %s5 = inlined_call_operand.hbm [shape: bf16[64,64], index: 5, kind: input, shape index: {}]
  %s6 = inlined_call_operand.vmem [shape: f32[1,64], index: 6, kind: input, shape index: {}]
  %s7 = inlined_call_operand.vmem [shape: bf16[64,32], index: 7, kind: input, shape index: {}]
  %s8 = inlined_call_operand.vmem [shape: f32[1,32], index: 8, kind: input, shape index: {}]
  %s9 = inlined_call_operand.hbm [shape: bf16[31,32], index: 9, kind: input, shape index: {}]
  %s10 = inlined_call_operand.hbm [shape: bf16[31,32], index: 10, kind: input, shape index: {}]
  %s11 = inlined_call_operand.hbm [shape: f32[16,32], index: 11, kind: output, shape index: {}]
  %s12 = sld [smem:[#allocation0]]
  $region97: #{tpu_custom_call.1} parent=0
    _
  %s14 = ssub.s32 1, %s12
  %s15 = scalar_select 0, %s14, %s12
  $region1: #{tpu_custom_call.1} parent=0
    #allocation2 [shape = 'u8[8192]{0}', space=vmem, size = 0x2000, scoped, tag = 'input window, operand 2, single buffered']
    #allocation3 [shape = 's32[2]{0}', space=sflag, size = 0x8, scoped, tag = 'scoped memory for tpu_custom_call.1']
    #allocation4 [shape = 's32[2]{0}', space=sflag, size = 0x8, scoped, tag = 'scoped memory for tpu_custom_call.1']
    #allocation5 [shape = 'u8[2048]{0}', space=vmem, size = 0x800, scoped, tag = 'input window, operand 3, single buffered']
    #allocation6 [shape = 's32[1]{0}', space=sflag, size = 0x4, scoped, tag = 'scoped memory for tpu_custom_call.1']
    #allocation7 [shape = 'u8[16384]{0}', space=vmem, size = 0x4000, scoped, tag = 'input window, operand 5, single buffered']
    #allocation8 [shape = 'u8[8192]{0}', space=vmem, size = 0x2000, scoped, tag = 'input window, operand 9, single buffered']
    #allocation9 [shape = 's32[1]{0}', space=sflag, size = 0x4, scoped, tag = 'scoped memory for tpu_custom_call.1']
    #allocation10 [shape = 'u8[8192]{0}', space=vmem, size = 0x2000, scoped, tag = 'input window, operand 10, single buffered']
    #allocation11 [shape = 'u8[8192]{0}', space=vmem, size = 0x2000, scoped, tag = 'output window, operand 0']
    %16 = vsyncpa [#allocation3], 0
    %17 = vsyncpa [#allocation6], 0
    %18 = vsyncpa [#allocation9], 0
    %19 = vsyncpa [#allocation4], 0
    %s20 = scalar_lea.sflag [#allocation4], 1
    %21 = vsyncpa %s20, 0
    loop: start=0, step=1, limit=4
    $region2: #{tpu_custom_call.1} parent=1 // loop_pre_header
      _
    $region3: #{tpu_custom_call.1} parent=1 // loop_header
      %s23 = sphi 0, %s27
      %p24 = scmp.ge.s32.totalorder %s23, 4
      %s33 = sphi 0, %s35
      %s36 = sphi 0, %s33
      %s37 = sphi 0, %s36
      %s53 = sphi 0, %s37
      %s57 = sphi 0, %s57
      %s59 = sphi 0, %s57
      %s60 = sphi 0, %s59
      %s74 = sphi 0, %s60
      %s78 = sphi 0, %s78
      %s80 = sphi 0, %s78
      %s81 = sphi 0, %s80
      %s95 = sphi 0, %s81
      %s99 = sphi 0, %s99
      %s101 = sphi 0, %s99
      %s102 = sphi 0, %s101
      %s116 = sphi 0, %s102
      %s120 = sphi 0, %s120
      %s122 = sphi 0, %s120
      %s123 = sphi 0, %s122
      %s137 = sphi 0, %s123
      %s141 = sphi 0, %s141
      %s143 = sphi 0, %s141
      %s144 = sphi 0, %s143
      %s158 = sphi 0, %s144
      %s162 = sphi 0, %s162
      %s164 = sphi 0, %s162
      %s165 = sphi 0, %s164
      %s179 = sphi 0, %s165
      %s183 = sphi 0, %s183
      %s185 = sphi 0, %s183
      %s186 = sphi 0, %s185
      %s200 = sphi 0, %s186
      %s204 = sphi 0, %s204
      %s206 = sphi 0, %s204
      %s207 = sphi 0, %s206
      %s221 = sphi 0, %s207
      %s225 = sphi 0, %s225
      %s227 = sphi 0, %s225
      %s228 = sphi 0, %s227
      %s242 = sphi 0, %s228
      %s246 = sphi 0, %s246
      %s248 = sphi 0, %s246
      %s249 = sphi 0, %s248
      %s263 = sphi 0, %s249
      %s269 = sphi 0, %s271
      %s272 = sphi 0, %s269
      %s273 = sphi 0, %s272
      %s289 = sphi 0, %s273
    $region4: #{tpu_custom_call.1} parent=1 // loop_header_branch
      %26 = sbr.rel (%p24) target = $region8
    $region5: #{tpu_custom_call.1} parent=1 // loop_body
      %s28 = ssub.s32 %s23, 1
      %s29 = ssub.s32 %s23, 2
      %s30 = sadd.s32 %s23, 1
      %s31 = ssub.s32 %s23, %s30
      %p32 = scmp.eq.s32.totalorder %s31, 0
      %s34 = sadd.s32 %s33, 1
      %s35 = scalar_select %p32, %s33, %s34
      %p38 = pneg %p32
      %p39 = scmp.eq.s32.totalorder %s23, 1
      %p40 = por %p38, %p39
      %p41 = scmp.ne.s32.totalorder %s33, %s36
      %p42 = scmp.eq.s32.totalorder %s23, 0
      %p43 = por %p41, %p42
      %p44 = scmp.ne.s32.totalorder %s33, %s36
      %p45 = scmp.eq.s32.totalorder %s28, 1
      %p46 = por %p44, %p45
      %p47 = scmp.ne.s32.totalorder %s36, %s37
      %p48 = scmp.eq.s32.totalorder %s28, 0
      %p49 = por %p47, %p48
      %p50 = scmp.ne.s32.totalorder %s36, %s37
      %p51 = scmp.eq.s32.totalorder %s29, 1
      %p52 = por %p50, %p51
      %p54 = scmp.ne.s32.totalorder %s37, %s53
      %p55 = scmp.eq.s32.totalorder %s29, 0
      %p56 = por %p54, %p55
      %s58 = sadd.s32 %s57, 1
      %p61 = scmp.eq.s32.totalorder %s23, 1
      %p62 = scmp.ne.s32.totalorder %s57, %s59
      %p63 = scmp.eq.s32.totalorder %s23, 0
      %p64 = por %p62, %p63
      %p65 = scmp.ne.s32.totalorder %s57, %s59
      %p66 = scmp.eq.s32.totalorder %s28, 1
      %p67 = por %p65, %p66
      %p68 = scmp.ne.s32.totalorder %s59, %s60
      %p69 = scmp.eq.s32.totalorder %s28, 0
      %p70 = por %p68, %p69
      %p71 = scmp.ne.s32.totalorder %s59, %s60
      %p72 = scmp.eq.s32.totalorder %s29, 1
      %p73 = por %p71, %p72
      %p75 = scmp.ne.s32.totalorder %s60, %s74
      %p76 = scmp.eq.s32.totalorder %s29, 0
      %p77 = por %p75, %p76
      %s79 = sadd.s32 %s78, 1
      %p82 = scmp.eq.s32.totalorder %s23, 1
      %p83 = scmp.ne.s32.totalorder %s78, %s80
      %p84 = scmp.eq.s32.totalorder %s23, 0
      %p85 = por %p83, %p84
      %p86 = scmp.ne.s32.totalorder %s78, %s80
      %p87 = scmp.eq.s32.totalorder %s28, 1
      %p88 = por %p86, %p87
      %p89 = scmp.ne.s32.totalorder %s80, %s81
      %p90 = scmp.eq.s32.totalorder %s28, 0
      %p91 = por %p89, %p90
      %p92 = scmp.ne.s32.totalorder %s80, %s81
      %p93 = scmp.eq.s32.totalorder %s29, 1
      %p94 = por %p92, %p93
      %p96 = scmp.ne.s32.totalorder %s81, %s95
      %p97 = scmp.eq.s32.totalorder %s29, 0
      %p98 = por %p96, %p97
      %s100 = sadd.s32 %s99, 1
      %p103 = scmp.eq.s32.totalorder %s23, 1
      %p104 = scmp.ne.s32.totalorder %s99, %s101
      %p105 = scmp.eq.s32.totalorder %s23, 0
      %p106 = por %p104, %p105
      %p107 = scmp.ne.s32.totalorder %s99, %s101
      %p108 = scmp.eq.s32.totalorder %s28, 1
      %p109 = por %p107, %p108
      %p110 = scmp.ne.s32.totalorder %s101, %s102
      %p111 = scmp.eq.s32.totalorder %s28, 0
      %p112 = por %p110, %p111
      %p113 = scmp.ne.s32.totalorder %s101, %s102
      %p114 = scmp.eq.s32.totalorder %s29, 1
      %p115 = por %p113, %p114
      %p117 = scmp.ne.s32.totalorder %s102, %s116
      %p118 = scmp.eq.s32.totalorder %s29, 0
      %p119 = por %p117, %p118
      %s121 = sadd.s32 %s120, 1
      %p124 = scmp.eq.s32.totalorder %s23, 1
      %p125 = scmp.ne.s32.totalorder %s120, %s122
      %p126 = scmp.eq.s32.totalorder %s23, 0
      %p127 = por %p125, %p126
      %p128 = scmp.ne.s32.totalorder %s120, %s122
      %p129 = scmp.eq.s32.totalorder %s28, 1
      %p130 = por %p128, %p129
      %p131 = scmp.ne.s32.totalorder %s122, %s123
      %p132 = scmp.eq.s32.totalorder %s28, 0
      %p133 = por %p131, %p132
      %p134 = scmp.ne.s32.totalorder %s122, %s123
      %p135 = scmp.eq.s32.totalorder %s29, 1
      %p136 = por %p134, %p135
      %p138 = scmp.ne.s32.totalorder %s123, %s137
      %p139 = scmp.eq.s32.totalorder %s29, 0
      %p140 = por %p138, %p139
      %s142 = sadd.s32 %s141, 1
      %p145 = scmp.eq.s32.totalorder %s23, 1
      %p146 = scmp.ne.s32.totalorder %s141, %s143
      %p147 = scmp.eq.s32.totalorder %s23, 0
      %p148 = por %p146, %p147
      %p149 = scmp.ne.s32.totalorder %s141, %s143
      %p150 = scmp.eq.s32.totalorder %s28, 1
      %p151 = por %p149, %p150
      %p152 = scmp.ne.s32.totalorder %s143, %s144
      %p153 = scmp.eq.s32.totalorder %s28, 0
      %p154 = por %p152, %p153
      %p155 = scmp.ne.s32.totalorder %s143, %s144
      %p156 = scmp.eq.s32.totalorder %s29, 1
      %p157 = por %p155, %p156
      %p159 = scmp.ne.s32.totalorder %s144, %s158
      %p160 = scmp.eq.s32.totalorder %s29, 0
      %p161 = por %p159, %p160
      %s163 = sadd.s32 %s162, 1
      %p166 = scmp.eq.s32.totalorder %s23, 1
      %p167 = scmp.ne.s32.totalorder %s162, %s164
      %p168 = scmp.eq.s32.totalorder %s23, 0
      %p169 = por %p167, %p168
      %p170 = scmp.ne.s32.totalorder %s162, %s164
      %p171 = scmp.eq.s32.totalorder %s28, 1
      %p172 = por %p170, %p171
      %p173 = scmp.ne.s32.totalorder %s164, %s165
      %p174 = scmp.eq.s32.totalorder %s28, 0
      %p175 = por %p173, %p174
      %p176 = scmp.ne.s32.totalorder %s164, %s165
      %p177 = scmp.eq.s32.totalorder %s29, 1
      %p178 = por %p176, %p177
      %p180 = scmp.ne.s32.totalorder %s165, %s179
      %p181 = scmp.eq.s32.totalorder %s29, 0
      %p182 = por %p180, %p181
      %s184 = sadd.s32 %s183, 1
      %p187 = scmp.eq.s32.totalorder %s23, 1
      %p188 = scmp.ne.s32.totalorder %s183, %s185
      %p189 = scmp.eq.s32.totalorder %s23, 0
      %p190 = por %p188, %p189
      %p191 = scmp.ne.s32.totalorder %s183, %s185
      %p192 = scmp.eq.s32.totalorder %s28, 1
      %p193 = por %p191, %p192
      %p194 = scmp.ne.s32.totalorder %s185, %s186
      %p195 = scmp.eq.s32.totalorder %s28, 0
      %p196 = por %p194, %p195
      %p197 = scmp.ne.s32.totalorder %s185, %s186
      %p198 = scmp.eq.s32.totalorder %s29, 1
      %p199 = por %p197, %p198
      %p201 = scmp.ne.s32.totalorder %s186, %s200
      %p202 = scmp.eq.s32.totalorder %s29, 0
      %p203 = por %p201, %p202
      %s205 = sadd.s32 %s204, 1
      %p208 = scmp.eq.s32.totalorder %s23, 1
      %p209 = scmp.ne.s32.totalorder %s204, %s206
      %p210 = scmp.eq.s32.totalorder %s23, 0
      %p211 = por %p209, %p210
      %p212 = scmp.ne.s32.totalorder %s204, %s206
      %p213 = scmp.eq.s32.totalorder %s28, 1
      %p214 = por %p212, %p213
      %p215 = scmp.ne.s32.totalorder %s206, %s207
      %p216 = scmp.eq.s32.totalorder %s28, 0
      %p217 = por %p215, %p216
      %p218 = scmp.ne.s32.totalorder %s206, %s207
      %p219 = scmp.eq.s32.totalorder %s29, 1
      %p220 = por %p218, %p219
      %p222 = scmp.ne.s32.totalorder %s207, %s221
      %p223 = scmp.eq.s32.totalorder %s29, 0
      %p224 = por %p222, %p223
      %s226 = sadd.s32 %s225, 1
      %p229 = scmp.eq.s32.totalorder %s23, 1
      %p230 = scmp.ne.s32.totalorder %s225, %s227
      %p231 = scmp.eq.s32.totalorder %s23, 0
      %p232 = por %p230, %p231
      %p233 = scmp.ne.s32.totalorder %s225, %s227
      %p234 = scmp.eq.s32.totalorder %s28, 1
      %p235 = por %p233, %p234
      %p236 = scmp.ne.s32.totalorder %s227, %s228
      %p237 = scmp.eq.s32.totalorder %s28, 0
      %p238 = por %p236, %p237
      %p239 = scmp.ne.s32.totalorder %s227, %s228
      %p240 = scmp.eq.s32.totalorder %s29, 1
      %p241 = por %p239, %p240
      %p243 = scmp.ne.s32.totalorder %s228, %s242
      %p244 = scmp.eq.s32.totalorder %s29, 0
      %p245 = por %p243, %p244
      %s247 = sadd.s32 %s246, 1
      %p250 = scmp.eq.s32.totalorder %s23, 1
      %p251 = scmp.ne.s32.totalorder %s246, %s248
      %p252 = scmp.eq.s32.totalorder %s23, 0
      %p253 = por %p251, %p252
      %p254 = scmp.ne.s32.totalorder %s246, %s248
      %p255 = scmp.eq.s32.totalorder %s28, 1
      %p256 = por %p254, %p255
      %p257 = scmp.ne.s32.totalorder %s248, %s249
      %p258 = scmp.eq.s32.totalorder %s28, 0
      %p259 = por %p257, %p258
      %p260 = scmp.ne.s32.totalorder %s248, %s249
      %p261 = scmp.eq.s32.totalorder %s29, 1
      %p262 = por %p260, %p261
      %p264 = scmp.ne.s32.totalorder %s249, %s263
      %p265 = scmp.eq.s32.totalorder %s29, 0
      %p266 = por %p264, %p265
      %s267 = ssub.s32 %s23, %s30
      %p268 = scmp.eq.s32.totalorder %s267, 0
      %s270 = sadd.s32 %s269, 1
      %s271 = scalar_select %p268, %s269, %s270
      %p274 = pneg %p268
      %p275 = scmp.eq.s32.totalorder %s23, 1
      %p276 = por %p274, %p275
      %p277 = scmp.ne.s32.totalorder %s269, %s272
      %p278 = scmp.eq.s32.totalorder %s23, 0
      %p279 = por %p277, %p278
      %p280 = scmp.ne.s32.totalorder %s269, %s272
      %p281 = scmp.eq.s32.totalorder %s28, 1
      %p282 = por %p280, %p281
      %p283 = scmp.ne.s32.totalorder %s272, %s273
      %p284 = scmp.eq.s32.totalorder %s28, 0
      %p285 = por %p283, %p284
      %p286 = scmp.ne.s32.totalorder %s272, %s273
      %p287 = scmp.eq.s32.totalorder %s29, 1
      %p288 = por %p286, %p287
      %p290 = scmp.ne.s32.totalorder %s273, %s289
      %p291 = scmp.eq.s32.totalorder %s29, 0
      %p292 = por %p290, %p291
      %p293 = scmp.le.s32.totalorder 1, %s23
      %p294 = scmp.lt.s32.totalorder %s23, 3
      %p295 = pnand %p293, %p294
      %p296 = pneg %p295
      // Predicated region
      $region9: #{tpu_custom_call.1} parent=5 // pred_check
        _
      $region10: #{tpu_custom_call.1} parent=5 // pred_check_branch
        %298 = sbr.rel (%p295) target = $region12
      $region11: #{tpu_custom_call.1} parent=5 // pred_region
        %s299 = ssub.s32 %s23, 1
        // Predicated region
        $region13: #{tpu_custom_call.1} parent=11 // pred_check
          %p300 = pneg %p70
        $region14: #{tpu_custom_call.1} parent=11 // pred_check_branch
          %302 = sbr.rel (%p300) target = $region16
        $region15: #{tpu_custom_call.1} parent=11 // pred_region
          _
        $region16: #{tpu_custom_call.1} parent=11 // pred_fallthru
          _
        // Predicated region
        $region17: #{tpu_custom_call.1} parent=11 // pred_check
          %p303 = pneg %p91
        $region18: #{tpu_custom_call.1} parent=11 // pred_check_branch
          %305 = sbr.rel (%p303) target = $region20
        $region19: #{tpu_custom_call.1} parent=11 // pred_region
          %307 = vsyncadd [#allocation3], 0
          %s308 = sshll.u32 %s2, 4
          %s309 = int_to_ptr.hbm [resolvable:$true] %s308
          %s310 = sshll.u32 [#allocation2], 4
          %s311 = int_to_ptr.vmem [resolvable:$true] %s310
          %316 = dma.hbm_to_vmem [thread:$0]  %s309, 256, %s311, [#allocation3], 64, 64, 4
        $region20: #{tpu_custom_call.1} parent=11 // pred_fallthru
          _
        // Predicated region
        $region21: #{tpu_custom_call.1} parent=11 // pred_check
          %p317 = pneg %p112
        $region22: #{tpu_custom_call.1} parent=11 // pred_check_branch
          %319 = sbr.rel (%p317) target = $region24
        $region23: #{tpu_custom_call.1} parent=11 // pred_region
          %321 = vsyncadd [#allocation6], 0
          %s323 = sshll.u32 %s3, 4
          %s324 = int_to_ptr.hbm [resolvable:$true] %s323
          %s325 = sshll.u32 [#allocation5], 4
          %s326 = int_to_ptr.vmem [resolvable:$true] %s325
          %328 = dma.hbm_to_vmem [thread:$0]  %s324, 64, %s326, [#allocation6]
        $region24: #{tpu_custom_call.1} parent=11 // pred_fallthru
          _
        // Predicated region
        $region25: #{tpu_custom_call.1} parent=11 // pred_check
          %p329 = pneg %p133
        $region26: #{tpu_custom_call.1} parent=11 // pred_check_branch
          %331 = sbr.rel (%p329) target = $region28
        $region27: #{tpu_custom_call.1} parent=11 // pred_region
          _
        $region28: #{tpu_custom_call.1} parent=11 // pred_fallthru
          _
        // Predicated region
        $region29: #{tpu_custom_call.1} parent=11 // pred_check
          %p332 = pneg %p154
        $region30: #{tpu_custom_call.1} parent=11 // pred_check_branch
          %334 = sbr.rel (%p332) target = $region32
        $region31: #{tpu_custom_call.1} parent=11 // pred_region
          %336 = vsyncadd [#allocation6], 0
          %s337 = sshll.u32 %s5, 4
          %s338 = int_to_ptr.hbm [resolvable:$true] %s337
          %s339 = sshll.u32 [#allocation7], 4
          %s340 = int_to_ptr.vmem [resolvable:$true] %s339
          %345 = dma.hbm_to_vmem [thread:$0]  %s338, 512, %s340, [#allocation6], 64, 64, 4
        $region32: #{tpu_custom_call.1} parent=11 // pred_fallthru
          _
        // Predicated region
        $region33: #{tpu_custom_call.1} parent=11 // pred_check
          %p346 = pneg %p175
        $region34: #{tpu_custom_call.1} parent=11 // pred_check_branch
          %348 = sbr.rel (%p346) target = $region36
        $region35: #{tpu_custom_call.1} parent=11 // pred_region
          _
        $region36: #{tpu_custom_call.1} parent=11 // pred_fallthru
          _
        // Predicated region
        $region37: #{tpu_custom_call.1} parent=11 // pred_check
          %p349 = pneg %p196
        $region38: #{tpu_custom_call.1} parent=11 // pred_check_branch
          %351 = sbr.rel (%p349) target = $region40
        $region39: #{tpu_custom_call.1} parent=11 // pred_region
          _
        $region40: #{tpu_custom_call.1} parent=11 // pred_fallthru
          _
        // Predicated region
        $region41: #{tpu_custom_call.1} parent=11 // pred_check
          %p352 = pneg %p217
        $region42: #{tpu_custom_call.1} parent=11 // pred_check_branch
          %354 = sbr.rel (%p352) target = $region44
        $region43: #{tpu_custom_call.1} parent=11 // pred_region
          _
        $region44: #{tpu_custom_call.1} parent=11 // pred_fallthru
          _
        // Predicated region
        $region45: #{tpu_custom_call.1} parent=11 // pred_check
          %p355 = pneg %p238
        $region46: #{tpu_custom_call.1} parent=11 // pred_check_branch
          %357 = sbr.rel (%p355) target = $region48
        $region47: #{tpu_custom_call.1} parent=11 // pred_region
          %359 = vsyncadd [#allocation9], 0
          %s360 = sshll.u32 %s9, 4
          %s361 = int_to_ptr.hbm [resolvable:$true] %s360
          %s362 = sshll.u32 [#allocation8], 4
          %s363 = int_to_ptr.vmem [resolvable:$true] %s362
          %368 = dma.hbm_to_vmem [thread:$0]  %s361, 256, %s363, [#allocation9], 64, 64, 4
        $region48: #{tpu_custom_call.1} parent=11 // pred_fallthru
          _
        // Predicated region
        $region49: #{tpu_custom_call.1} parent=11 // pred_check
          %p369 = pneg %p259
        $region50: #{tpu_custom_call.1} parent=11 // pred_check_branch
          %371 = sbr.rel (%p369) target = $region52
        $region51: #{tpu_custom_call.1} parent=11 // pred_region
          %373 = vsyncadd [#allocation9], 0
          %s374 = sshll.u32 %s10, 4
          %s375 = int_to_ptr.hbm [resolvable:$true] %s374
          %s376 = sshll.u32 [#allocation10], 4
          %s377 = int_to_ptr.vmem [resolvable:$true] %s376
          %382 = dma.hbm_to_vmem [thread:$0]  %s375, 256, %s377, [#allocation9], 64, 64, 4
        $region52: #{tpu_custom_call.1} parent=11 // pred_fallthru
          _
      $region12: #{tpu_custom_call.1} parent=5 // pred_fallthru
        _
      %p383 = scmp.lt.s32.totalorder %s23, 2
      // Predicated region
      $region53: #{tpu_custom_call.1} parent=5 // pred_check
        %p384 = pneg %p383
      $region54: #{tpu_custom_call.1} parent=5 // pred_check_branch
        %386 = sbr.rel (%p384) target = $region56
      $region55: #{tpu_custom_call.1} parent=5 // pred_region
        // Predicated region
        $region57: #{tpu_custom_call.1} parent=55 // pred_check
          %p387 = pneg %p43
        $region58: #{tpu_custom_call.1} parent=55 // pred_check_branch
          %389 = sbr.rel (%p387) target = $region60
        $region59: #{tpu_custom_call.1} parent=55 // pred_region
          %p390 = scmp.lt.s32.totalorder %s23, 1
          %s391 = scalar_select %p390, %s23, 1
          %s392 = smul.addr %s391, 8
          %s393 = scalar_lea.vmem %s0, %s392
        $region60: #{tpu_custom_call.1} parent=55 // pred_fallthru
          _
      $region56: #{tpu_custom_call.1} parent=5 // pred_fallthru
        _
      %p394 = scmp.le.s32.totalorder 1, %s23
      %p395 = scmp.lt.s32.totalorder %s23, 3
      %p396 = pnand %p394, %p395
      %p397 = pneg %p396
      // Predicated region
      $region61: #{tpu_custom_call.1} parent=5 // pred_check
        _
      $region62: #{tpu_custom_call.1} parent=5 // pred_check_branch
        %399 = sbr.rel (%p396) target = $region64
      $region63: #{tpu_custom_call.1} parent=5 // pred_region
        %s400 = ssub.s32 %s23, 1
        // Predicated region
        $region65: #{tpu_custom_call.1} parent=63 // pred_check
          %p401 = pneg %p91
        $region66: #{tpu_custom_call.1} parent=63 // pred_check_branch
          %403 = sbr.rel (%p401) target = $region68
        $region67: #{tpu_custom_call.1} parent=63 // pred_region
          %405 = dma.done [#allocation3], 256
        $region68: #{tpu_custom_call.1} parent=63 // pred_fallthru
          _
        // Predicated region
        $region69: #{tpu_custom_call.1} parent=63 // pred_check
          %p406 = pneg %p112
        $region70: #{tpu_custom_call.1} parent=63 // pred_check_branch
          %408 = sbr.rel (%p406) target = $region72
        $region71: #{tpu_custom_call.1} parent=63 // pred_region
          %410 = dma.done [#allocation6], 64
        $region72: #{tpu_custom_call.1} parent=63 // pred_fallthru
          _
        // Predicated region
        $region73: #{tpu_custom_call.1} parent=63 // pred_check
          %p411 = pneg %p154
        $region74: #{tpu_custom_call.1} parent=63 // pred_check_branch
          %413 = sbr.rel (%p411) target = $region76
        $region75: #{tpu_custom_call.1} parent=63 // pred_region
          %415 = dma.done [#allocation6], 512
        $region76: #{tpu_custom_call.1} parent=63 // pred_fallthru
          _
        // Predicated region
        $region77: #{tpu_custom_call.1} parent=63 // pred_check
          %p416 = pneg %p238
        $region78: #{tpu_custom_call.1} parent=63 // pred_check_branch
          %418 = sbr.rel (%p416) target = $region80
        $region79: #{tpu_custom_call.1} parent=63 // pred_region
          %420 = dma.done [#allocation9], 256
        $region80: #{tpu_custom_call.1} parent=63 // pred_fallthru
          _
        // Predicated region
        $region81: #{tpu_custom_call.1} parent=63 // pred_check
          %p421 = pneg %p259
        $region82: #{tpu_custom_call.1} parent=63 // pred_check_branch
          %423 = sbr.rel (%p421) target = $region84
        $region83: #{tpu_custom_call.1} parent=63 // pred_region
          %425 = dma.done [#allocation9], 256
        $region84: #{tpu_custom_call.1} parent=63 // pred_fallthru
          _
        %p426 = scmp.lt.s32.totalorder %s28, 1
        %s427 = scalar_select %p426, %s28, 1
        %s428 = smul.addr %s427, 8
        %s429 = scalar_lea.vmem %s0, %s428
        %p430 = pneg %p49
        %p431 = pneg %p46
        %p432 = pneg %p70
        %p433 = pneg %p67
        %p434 = pneg %p91
        %p435 = pneg %p88
        %p436 = pneg %p112
        %p437 = pneg %p109
        %p438 = pneg %p133
        %p439 = pneg %p130
        %p440 = pneg %p154
        %p441 = pneg %p151
        %p442 = pneg %p175
        %p443 = pneg %p172
        %p444 = pneg %p196
        %p445 = pneg %p193
        %p446 = pneg %p217
        %p447 = pneg %p214
        %p448 = pneg %p238
        %p449 = pneg %p235
        %p450 = pneg %p259
        %p451 = pneg %p256
        %p452 = pneg %p285
        %p453 = pneg %p282
        %s454 = sand.u32 %s272, 1
        %s455 = scalar_lea.sflag [#allocation4], %s454
        %s456 = sand.u32 %s272, 1
        %s457 = smul.addr %s456, 8
        %s458 = scalar_lea.vmem [#allocation11], %s457
        %p459 = scmp.lt.s32.totalorder %s28, 1
        %s460 = scalar_select %p459, %s28, 1
        %s461 = smul.addr %s460, 8
        %s462 = scalar_lea.vmem %s0, %s461
        %v464 = vld [vmem:[%s462] sm:$0xff]
        %v465 = vmul.f32 %v464, %v464
        %vm466 = vcmask 261120
        %v467 = vsel %vm466, %v465, 0.0
        %468 = vadd.xlane.f32.xlu0 %v467
        %v469 = vpop.xlane.xlu0 %468
        %v470 = vrcp.pop 32.0
        %v471 = vmul.f32 32.0, %v470
        %v472 = vsub.f32 1.0, %v471
        %v473 = vmul.f32 %v470, %v472
        %v474 = vadd.f32 %v470, %v473
        %vm475 = vweird.f32 %v470
        %v476 = vsel %vm475, %v470, %v474
        %v477 = vmul.f32 %v469, %v476
        %v478 = vadd.f32 %v477, 1e-06
        %v479 = vrsqrt.pop %v478
        %v480 = vmul.f32 %v479, %v478
        %v481 = vmul.f32 %v480, %v479
        %v482 = vmul.f32 0.5, %v481
        %v483 = vsub.f32 1.5, %v482
        %v484 = vmul.f32 %v479, %v483
        %vm485 = vweird.f32 %v478
        %vm486 = vweird.f32 %v479
        %vm487 = vmor %vm485, %vm486
        %v488 = vsel %vm487, %v479, %v484
        %v489 = vmul.f32 %v464, %v488
        %v490 = vld [vmem:[%s1] sm:$0x1]
        %v491 = vadd.f32 %v490, 1.0
        %v493 = vperm.slane %v491, 0
        %v495 = vmul.f32 %v489, %v493
        %v496 = vpack.c.bf16 %v495, %v495
        %v497 = vld [vmem:[#allocation2] sm:$0xf]
        %v498 = vld [vmem:[#allocation2 + $0x4] sm:$0xf]
        %v499 = vld [vmem:[#allocation2 + $0x8] sm:$0xf]
        %v500 = vld [vmem:[#allocation2 + $0xc] sm:$0xf]
        %v505 = vunpack.c.l.b16 %v497
        %v506 = vunpack.c.l.b16 %v498
        %v507 = vunpack.c.l.b16 %v499
        %v508 = vunpack.c.l.b16 %v500
        %v509 = vpack.c.b16 %v506, %v505
        %v510 = vpack.c.b16 %v508, %v507
        %v514 = vsel %vm466, %v496, 0
        %516 = vmatpush.bf16.msra.mxu0 0
        %517 = vmatpush.bf16.msra.mxu0 0
        %518 = vmatpush.bf16.msra.mxu0 0
        %519 = vmatpush.bf16.msra.mxu0 0
        %520 = vmatpush.bf16.msra.mxu0 0
        %521 = vmatpush.bf16.msra.mxu0 0
        %522 = vmatpush.bf16.msra.mxu0 %v510
        %523 = vmatpush.bf16.msra.mxu0 %v509
        %524 = vmatmul.bf16.gmra.mxu0 %v514
        %v525 = vpop.f32.mrf.mxu0
        %v526 = vadd.f32 0.0, %v525
        %v527 = vpop.f32.mrf.mxu0
        %528 = vdwg.mxu0
        %v529 = vmul.f32 %v526, 0.5
        %v530 = vmul.f32 %v526, 0.70710677
        %v531 = vmul.f32 %v530, %v530
        %v532 = vmin.f32 16.0, %v531
        %v533 = vmul.f32 %v532, 2.1237322e-06
        %v534 = vadd.f32 %v533, 0.00028619796
        %v535 = vmul.f32 %v532, %v534
        %v536 = vadd.f32 %v535, 0.0036580483
        %v537 = vmul.f32 %v532, %v536
        %v538 = vadd.f32 %v537, 0.05243302
        %v539 = vmul.f32 %v532, %v538
        %v540 = vadd.f32 %v539, 0.18741608
        %v541 = vmul.f32 %v532, %v540
        %v542 = vadd.f32 %v541, 1.1283791
        %v543 = vmul.f32 %v530, %v542
        %v544 = vmul.f32 %v532, 3.8918573e-05
        %v545 = vadd.f32 %v544, 0.001143296
        %v546 = vmul.f32 %v532, %v545
        %v547 = vadd.f32 %v546, 0.014752088
        %v548 = vmul.f32 %v532, %v547
        %v549 = vadd.f32 %v548, 0.112945676
        %v550 = vmul.f32 %v532, %v549
        %v551 = vadd.f32 %v550, 0.4994258
        %v552 = vmul.f32 %v532, %v551
        %v553 = vadd.f32 %v552, 1.0
        %v554 = vrcp.pop %v553
        %v555 = vmul.f32 %v553, %v554
        %v556 = vsub.f32 1.0, %v555
        %v557 = vmul.f32 %v554, %v556
        %v558 = vadd.f32 %v554, %v557
        %vm559 = vweird.f32 %v553
        %vm560 = vweird.f32 %v554
        %vm561 = vmor %vm559, %vm560
        %v562 = vsel %vm561, %v554, %v558
        %v563 = vand.u32 2147483647, %v553
        %vm564 = vcmp.eq.f32.partialorder %v563, 8.507059e+37
        %v565 = vand.u32 %v553, 2147483648
        %v566 = vor.u32 1.1754944e-38, %v565
        %v567 = vsel %vm564, %v566, %v562
        %v568 = vmul.f32 %v543, %v567
        %v569 = vmin.f32 %v568, 1.0
        %v570 = vmax.f32 %v569, -1.0
        %v571 = vadd.f32 %v570, 1.0
        %v572 = vmul.f32 %v529, %v571
        %v573 = vlaneseq
        %v574 = vshrl.u32 %v573, 7
        %vm575 = vcmp.lt.s32.totalorder %v574, 0
        %v576 = vsub.s32 0, %v574
        %v577 = vsel %vm575, %v576, %v574
        %v578 = vshrl.u32 %v577, 3
        %v579 = vand.u32 %v577, 7
        %v580 = vsub.s32 0, %v579
        %v581 = vsel %vm575, %v580, %v579
        %vm582 = vcmp.ne.s32.totalorder %v581, 0
        %vm583 = vcmp.lt.s32.totalorder %v581, 0
        %vm584 = vmand %vm583, %vm582
        %v585 = vadd.s32 %v581, 8
        %v586 = vsel %vm584, %v585, %v581
        %v587 = vld [vmem:[#allocation5] sm:$0xf]
        %v588 = vperm.slane %v587, 3
        %590 = vrot.lane.b32.xlu0 %v588, 64
        %v591 = vpop.permute.xlu0 %590
        %v593 = vmul.f32 %v526, %v591
        %595 = vrot.lane.b32.xlu0 %v526, 64
        %v596 = vpop.permute.xlu0 %595
        %v598 = vrot.slane %v596, 7
        %vm599 = vcmp.ge.s32.totalorder %v586, 1
        %v600 = vsel %vm599, 1, 0
        %vm601 = vcmp.eq.s32.totalorder %v600, 1
        %v602 = vsel %vm601, %v598, 0.0
        %v603 = vperm.slane %v587, 2
        %v604 = vmul.f32 %v602, %v603
        %606 = vrot.lane.b32.xlu0 %v604, 64
        %v607 = vpop.permute.xlu0 %606
        %v609 = vadd.f32 %v593, %v607
        %v610 = vrot.slane %v596, 6
        %vm611 = vcmp.ge.s32.totalorder %v586, 2
        %v612 = vsel %vm611, 1, 0
        %vm613 = vcmp.eq.s32.totalorder %v612, 1
        %v614 = vsel %vm613, %v610, 0.0
        %v615 = vperm.slane %v587, 1
        %v616 = vmul.f32 %v614, %v615
        %618 = vrot.lane.b32.xlu0 %v616, 64
        %v619 = vpop.permute.xlu0 %618
        %v621 = vadd.f32 %v609, %v619
        %v622 = vrot.slane %v596, 5
        %vm623 = vcmp.ge.s32.totalorder %v586, 3
        %v624 = vsel %vm623, 1, 0
        %vm625 = vcmp.eq.s32.totalorder %v624, 1
        %v626 = vsel %vm625, %v622, 0.0
        %v627 = vperm.slane %v587, 0
        %v628 = vmul.f32 %v626, %v627
        %630 = vrot.lane.b32.xlu0 %v628, 64
        %v631 = vpop.permute.xlu0 %630
        %v633 = vadd.f32 %v621, %v631
        %v634 = vpack.c.bf16 %v633, %v633
        %v635 = vld [vmem:[%s4] sm:$0xf]
        %v636 = vld [vmem:[%s4 + $0x4] sm:$0xf]
        %v637 = vld [vmem:[%s4 + $0x8] sm:$0xf]
        %v638 = vld [vmem:[%s4 + $0xc] sm:$0xf]
        %v639 = vld [vmem:[%s4 + $0x10] sm:$0xf]
        %v640 = vld [vmem:[%s4 + $0x14] sm:$0xf]
        %v641 = vld [vmem:[%s4 + $0x18] sm:$0xf]
        %v642 = vld [vmem:[%s4 + $0x1c] sm:$0xf]
        %644 = vrot.lane.b32.xlu0 %v634, 64
        %v645 = vpop.permute.xlu0 %644
        %v654 = vunpack.c.l.b16 %v635
        %v655 = vunpack.c.l.b16 %v636
        %v656 = vunpack.c.l.b16 %v637
        %v657 = vunpack.c.l.b16 %v638
        %v658 = vunpack.c.l.b16 %v639
        %v659 = vunpack.c.l.b16 %v640
        %v660 = vunpack.c.l.b16 %v641
        %v661 = vunpack.c.l.b16 %v642
        %v662 = vpack.c.b16 %v655, %v654
        %v663 = vpack.c.b16 %v657, %v656
        %v664 = vpack.c.b16 %v659, %v658
        %v665 = vpack.c.b16 %v661, %v660
        %vm670 = vcmask 523264
        %v672 = vsel %vm670, %v645, 0
        %674 = vmatpush.bf16.msra.mxu0 0
        %675 = vmatpush.bf16.msra.mxu0 0
        %676 = vmatpush.bf16.msra.mxu0 0
        %677 = vmatpush.bf16.msra.mxu0 0
        %678 = vmatpush.bf16.msra.mxu0 %v665
        %679 = vmatpush.bf16.msra.mxu0 %v664
        %680 = vmatpush.bf16.msra.mxu0 %v663
        %681 = vmatpush.bf16.msra.mxu0 %v662
        %682 = vmatmul.bf16.gmra.mxu0 %v672
        %v683 = vpop.f32.mrf.mxu0
        %v684 = vadd.f32 0.0, %v683
        %v685 = vpop.f32.mrf.mxu0
        %686 = vdwg.mxu0
        %v687 = vxor.u32 %v684, 2147483648
        %v688 = vmul.f32 %v687, 1.442695
        %v689 = vpow.pop %v688
        %v690 = vadd.f32 %v689, 1.0
        %v691 = vrcp.pop %v690
        %v692 = vmul.f32 %v690, %v691
        %v693 = vsub.f32 1.0, %v692
        %v694 = vmul.f32 %v691, %v693
        %v695 = vadd.f32 %v691, %v694
        %vm696 = vweird.f32 %v690
        %vm697 = vweird.f32 %v691
        %vm698 = vmor %vm696, %vm697
        %v699 = vsel %vm698, %v691, %v695
        %v700 = vand.u32 2147483647, %v690
        %vm701 = vcmp.eq.f32.partialorder %v700, 8.507059e+37
        %v702 = vand.u32 %v690, 2147483648
        %v703 = vor.u32 1.1754944e-38, %v702
        %v704 = vsel %vm701, %v703, %v699
        %v705 = vmul.f32 1.0, %v704
        %v706 = vmul.f32 %v633, %v705
        %v707 = vpack.c.bf16 %v706, %v706
        %v708 = vld [vmem:[#allocation7] sm:$0xf]
        %v709 = vld [vmem:[#allocation7 + $0x4] sm:$0xf]
        %v710 = vld [vmem:[#allocation7 + $0x8] sm:$0xf]
        %v711 = vld [vmem:[#allocation7 + $0xc] sm:$0xf]
        %v712 = vld [vmem:[#allocation7 + $0x10] sm:$0xf]
        %v713 = vld [vmem:[#allocation7 + $0x14] sm:$0xf]
        %v714 = vld [vmem:[#allocation7 + $0x18] sm:$0xf]
        %v715 = vld [vmem:[#allocation7 + $0x1c] sm:$0xf]
        %v716 = vld [vmem:[%s6] sm:$0x1]
        %v718 = vperm.slane %v716, 0
        %721 = vrot.lane.b32.xlu0 %v707, 64
        %v722 = vpop.permute.xlu0 %721
        %v731 = vunpack.c.l.b16 %v708
        %v732 = vunpack.c.l.b16 %v709
        %v733 = vunpack.c.l.b16 %v710
        %v734 = vunpack.c.l.b16 %v711
        %v735 = vunpack.c.l.b16 %v712
        %v736 = vunpack.c.l.b16 %v713
        %v737 = vunpack.c.l.b16 %v714
        %v738 = vunpack.c.l.b16 %v715
        %v739 = vpack.c.b16 %v732, %v731
        %v740 = vpack.c.b16 %v734, %v733
        %v741 = vpack.c.b16 %v736, %v735
        %v742 = vpack.c.b16 %v738, %v737
        %v748 = vsel %vm670, %v722, 0
        %750 = vmatpush.bf16.msra.mxu0 0
        %751 = vmatpush.bf16.msra.mxu0 0
        %752 = vmatpush.bf16.msra.mxu0 0
        %753 = vmatpush.bf16.msra.mxu0 0
        %754 = vmatpush.bf16.msra.mxu0 %v742
        %755 = vmatpush.bf16.msra.mxu0 %v741
        %756 = vmatpush.bf16.msra.mxu0 %v740
        %757 = vmatpush.bf16.msra.mxu0 %v739
        %758 = vmatmul.bf16.gmra.mxu0 %v748
        %v759 = vpop.f32.mrf.mxu0
        %v760 = vadd.f32 %v718, %v759
        %v761 = vpop.f32.mrf.mxu0
        %762 = vdwg.mxu0
        %v763 = vtanh.pop %v760
        %v764 = vmul.f32 %v705, %v763
        %v765 = vsub.f32 1.0, %v705
        %767 = vrot.lane.b32.xlu0 %v633, 64
        %v768 = vpop.permute.xlu0 %767
        %v770 = vmul.f32 %v765, %v768
        %v771 = vadd.f32 %v764, %v770
        %v772 = vmul.f32 %v771, %v572
        %v773 = vpack.c.bf16 %v772, %v772
        %v774 = vld [vmem:[%s7] sm:$0xf]
        %v775 = vld [vmem:[%s7 + $0x4] sm:$0xf]
        %v776 = vld [vmem:[%s7 + $0x8] sm:$0xf]
        %v777 = vld [vmem:[%s7 + $0xc] sm:$0xf]
        %v778 = vld [vmem:[%s7 + $0x10] sm:$0xf]
        %v779 = vld [vmem:[%s7 + $0x14] sm:$0xf]
        %v780 = vld [vmem:[%s7 + $0x18] sm:$0xf]
        %v781 = vld [vmem:[%s7 + $0x1c] sm:$0xf]
        %v790 = vunpack.c.l.b16 %v774
        %v791 = vunpack.c.l.b16 %v775
        %v792 = vunpack.c.l.b16 %v776
        %v793 = vunpack.c.l.b16 %v777
        %v794 = vunpack.c.l.b16 %v778
        %v795 = vunpack.c.l.b16 %v779
        %v796 = vunpack.c.l.b16 %v780
        %v797 = vunpack.c.l.b16 %v781
        %v798 = vpack.c.b16 %v791, %v790
        %v799 = vpack.c.b16 %v793, %v792
        %v800 = vpack.c.b16 %v795, %v794
        %v801 = vpack.c.b16 %v797, %v796
        %v807 = vsel %vm670, %v773, 0
        %809 = vmatpush.bf16.msra.mxu0 0
        %810 = vmatpush.bf16.msra.mxu0 0
        %811 = vmatpush.bf16.msra.mxu0 0
        %812 = vmatpush.bf16.msra.mxu0 0
        %813 = vmatpush.bf16.msra.mxu0 %v801
        %814 = vmatpush.bf16.msra.mxu0 %v800
        %815 = vmatpush.bf16.msra.mxu0 %v799
        %816 = vmatpush.bf16.msra.mxu0 %v798
        %817 = vmatmul.bf16.gmra.mxu0 %v807
        %v818 = vpop.f32.mrf.mxu0
        %v819 = vadd.f32 0.0, %v818
        %v820 = vpop.f32.mrf.mxu0
        %821 = vdwg.mxu0
        %v822 = vadd.f32 %v464, %v819
        %v823 = vmul.f32 %v822, %v822
        %v824 = vsel %vm466, %v823, 0.0
        %825 = vadd.xlane.f32.xlu0 %v824
        %v826 = vpop.xlane.xlu0 %825
        %v827 = vmul.f32 %v826, %v476
        %v828 = vadd.f32 %v827, 1e-06
        %v829 = vrsqrt.pop %v828
        %v830 = vmul.f32 %v829, %v828
        %v831 = vmul.f32 %v830, %v829
        %v832 = vmul.f32 0.5, %v831
        %v833 = vsub.f32 1.5, %v832
        %v834 = vmul.f32 %v829, %v833
        %vm835 = vweird.f32 %v828
        %vm836 = vweird.f32 %v829
        %vm837 = vmor %vm835, %vm836
        %v838 = vsel %vm837, %v829, %v834
        %v839 = vmul.f32 %v822, %v838
        %v840 = vld [vmem:[%s8] sm:$0x1]
        %v841 = vadd.f32 %v840, 1.0
        %v843 = vperm.slane %v841, 0
        %v845 = vmul.f32 %v839, %v843
        %v846 = vpack.c.bf16 %v845, %v845
        %v847 = vld [vmem:[#allocation8] sm:$0xf]
        %v848 = vld [vmem:[#allocation8 + $0x4] sm:$0xf]
        %v849 = vld [vmem:[#allocation8 + $0x8] sm:$0xf]
        %v850 = vld [vmem:[#allocation8 + $0xc] sm:$0xf]
        %v855 = vunpack.c.l.b16 %v847
        %v856 = vunpack.c.l.b16 %v848
        %v857 = vunpack.c.l.b16 %v849
        %v858 = vunpack.c.l.b16 %v850
        %v859 = vpack.c.b16 %v856, %v855
        %v860 = vpack.c.b16 %v858, %v857
        %v862 = vsel %vm466, %v846, 0
        %v865 = vsel %vm466, %v859, 0
        %v868 = vsel %vm466, %v860, 0
        %870 = vmatpush.bf16.xpose.msra.mxu0 0
        %871 = vmatpush.bf16.xpose.msra.mxu0 0
        %872 = vmatpush.bf16.xpose.msra.mxu0 0
        %873 = vmatpush.bf16.xpose.msra.mxu0 0
        %874 = vmatpush.bf16.xpose.msra.mxu0 0
        %875 = vmatpush.bf16.xpose.msra.mxu0 0
        %876 = vmatpush.bf16.xpose.msra.mxu0 %v868
        %877 = vmatpush.bf16.xpose.msra.mxu0 %v865
        %878 = vmatmul.bf16.gmra.mxu0 %v862
        %v879 = vpop.f32.mrf.mxu0
        %v880 = vadd.f32 0.0, %v879
        %v881 = vpop.f32.mrf.mxu0
        %882 = vdwg.mxu0
        %v883 = vlaneseq
        %v884 = vand.u32 %v883, 127
        %vm885 = vcmp.eq.s32.totalorder %v884, 0
        %v886 = vsel %vm885, %v880, 0.0
        %vm887 = vcmask 252928
        %v888 = vsel %vm887, %v886, 0.0
        %889 = vadd.xlane.f32.xlu0 %v888
        %v890 = vpop.xlane.xlu0 %889
        %v891 = vsel %vm885, %v890, 0.0
        %v892 = vadd.f32 %v891, 0.0
        %vm893 = vcmp.gt.f32.partialorder %v890, 0.0
        %v894 = vsel %vm893, 1, 0
        %v895 = vadd.s32 %v894, 1
        %vm896 = vcmp.eq.s32.totalorder %v895, %v884
        %v897 = vsel %vm896, %v880, 0.0
        %v898 = vsel %vm887, %v897, 0.0
        %899 = vadd.xlane.f32.xlu0 %v898
        %v900 = vpop.xlane.xlu0 %899
        %v901 = vsel %vm896, %v900, 0.0
        %v902 = vadd.f32 %v892, %v901
        %v903 = vmul.u32 %v895, 2
        %v904 = vadd.s32 %v903, 1
        %vm905 = vcmp.gt.f32.partialorder %v900, 0.0
        %v906 = vsel %vm905, 1, 0
        %v907 = vadd.s32 %v904, %v906
        %vm908 = vcmp.eq.s32.totalorder %v907, %v884
        %v909 = vsel %vm908, %v880, 0.0
        %v910 = vsel %vm887, %v909, 0.0
        %911 = vadd.xlane.f32.xlu0 %v910
        %v912 = vpop.xlane.xlu0 %911
        %v913 = vsel %vm908, %v912, 0.0
        %v914 = vadd.f32 %v902, %v913
        %v915 = vmul.u32 %v907, 2
        %v916 = vadd.s32 %v915, 1
        %vm917 = vcmp.gt.f32.partialorder %v912, 0.0
        %v918 = vsel %vm917, 1, 0
        %v919 = vadd.s32 %v916, %v918
        %vm920 = vcmp.eq.s32.totalorder %v919, %v884
        %v921 = vsel %vm920, %v880, 0.0
        %v922 = vsel %vm887, %v921, 0.0
        %923 = vadd.xlane.f32.xlu0 %v922
        %v924 = vpop.xlane.xlu0 %923
        %v925 = vsel %vm920, %v924, 0.0
        %v926 = vadd.f32 %v914, %v925
        %v927 = vmul.u32 %v919, 2
        %v928 = vadd.s32 %v927, 1
        %vm929 = vcmp.gt.f32.partialorder %v924, 0.0
        %v930 = vsel %vm929, 1, 0
        %v931 = vadd.s32 %v928, %v930
        %vm932 = vcmp.eq.s32.totalorder %v931, %v884
        %v933 = vsel %vm932, %v880, 0.0
        %v934 = vsel %vm887, %v933, 0.0
        %935 = vadd.xlane.f32.xlu0 %v934
        %v936 = vpop.xlane.xlu0 %935
        %v937 = vsel %vm932, %v936, 0.0
        %v938 = vadd.f32 %v926, %v937
        %v939 = vpack.c.bf16 %v938, %v938
        %v940 = vld [vmem:[#allocation10] sm:$0xf]
        %v941 = vld [vmem:[#allocation10 + $0x4] sm:$0xf]
        %v942 = vld [vmem:[#allocation10 + $0x8] sm:$0xf]
        %v943 = vld [vmem:[#allocation10 + $0xc] sm:$0xf]
        %v948 = vunpack.c.l.b16 %v940
        %v949 = vunpack.c.l.b16 %v941
        %v950 = vunpack.c.l.b16 %v942
        %v951 = vunpack.c.l.b16 %v943
        %v952 = vpack.c.b16 %v949, %v948
        %v953 = vpack.c.b16 %v951, %v950
        %v956 = vsel %vm887, %v939, 0
        %vm958 = vcmask 1046528
        %vm959 = vcmask 1047552
        %v960 = vsel %vm958, 4294967295, 65535
        %v961 = vsel %vm959, %v960, 0
        %v963 = vand.u32 %v953, %v961
        %965 = vmatpush.bf16.msra.mxu0 0
        %966 = vmatpush.bf16.msra.mxu0 0
        %967 = vmatpush.bf16.msra.mxu0 0
        %968 = vmatpush.bf16.msra.mxu0 0
        %969 = vmatpush.bf16.msra.mxu0 0
        %970 = vmatpush.bf16.msra.mxu0 0
        %971 = vmatpush.bf16.msra.mxu0 %v963
        %972 = vmatpush.bf16.msra.mxu0 %v952
        %973 = vmatmul.bf16.gmra.mxu0 %v956
        %v974 = vpop.f32.mrf.mxu0
        %v975 = vadd.f32 0.0, %v974
        %v976 = vpop.f32.mrf.mxu0
        %977 = vdwg.mxu0
        %v978 = vadd.f32 %v822, %v975
        %979 = vst.msk [vmem:[%s458] sm:$0xff] %vm466, %v978
        %s980 = sand.u32 %s272, 1
        %s981 = scalar_lea.sflag [#allocation4], %s980
        %s982 = sand.u32 %s272, 1
        %s983 = smul.addr %s982, 8
        %s984 = scalar_lea.vmem [#allocation11], %s983
        // Predicated region
        $region85: #{tpu_custom_call.1} parent=63 // pred_check
          %p985 = pneg %p282
        $region86: #{tpu_custom_call.1} parent=63 // pred_check_branch
          %987 = sbr.rel (%p985) target = $region88
        $region87: #{tpu_custom_call.1} parent=63 // pred_region
          %989 = vsyncadd %s981, 0
          %s990 = smul.addr %s28, 8
          %s991 = scalar_lea.hbm %s11, %s990
          %s993 = sshll.u32 %s984, 4
          %s994 = int_to_ptr.vmem [resolvable:$true] %s993
          %s995 = sshll.u32 %s991, 4
          %s996 = int_to_ptr.hbm [resolvable:$true] %s995
          %998 = dma.vmem_to_hbm [thread:$0]  %s994, 128, %s996, %s981
        $region88: #{tpu_custom_call.1} parent=63 // pred_fallthru
          _
      $region64: #{tpu_custom_call.1} parent=5 // pred_fallthru
        _
      %p999 = scmp.le.s32.totalorder 2, %s23
      // Predicated region
      $region89: #{tpu_custom_call.1} parent=5 // pred_check
        %p1000 = pneg %p999
      $region90: #{tpu_custom_call.1} parent=5 // pred_check_branch
        %1002 = sbr.rel (%p1000) target = $region92
      $region91: #{tpu_custom_call.1} parent=5 // pred_region
        %s1003 = ssub.s32 %s23, 2
        // Predicated region
        $region93: #{tpu_custom_call.1} parent=91 // pred_check
          %p1004 = pneg %p288
        $region94: #{tpu_custom_call.1} parent=91 // pred_check_branch
          %1006 = sbr.rel (%p1004) target = $region96
        $region95: #{tpu_custom_call.1} parent=91 // pred_region
          %s1007 = sand.u32 %s273, 1
          %s1008 = scalar_lea.sflag [#allocation4], %s1007
          %s1009 = sand.u32 %s273, 1
          %s1010 = smul.addr %s1009, 8
          %s1011 = scalar_lea.vmem [#allocation11], %s1010
          %1013 = dma.done %s1008, 128
        $region96: #{tpu_custom_call.1} parent=91 // pred_fallthru
          _
      $region92: #{tpu_custom_call.1} parent=5 // pred_fallthru
        _
    $region6: #{tpu_custom_call.1} parent=1 // loop_footer
      %s27 = sadd.s32 1, %s23
    $region7: #{tpu_custom_call.1} parent=1 // loop_footer_branch
      %22 = sbr.rel target = $region3
    $region8: #{tpu_custom_call.1} parent=1 // loop_exit
      _
    %1014 = vsyncpa [#allocation3], 1
    %s1015 = scalar_lea.sflag [#allocation3], 1
    %1016 = vsyncpa %s1015, 1
    %1017 = vsyncpa [#allocation6], 1
    %1018 = vsyncpa [#allocation9], 1
    %1019 = vsyncpa [#allocation4], 1
    %s1020 = scalar_lea.sflag [#allocation4], 1
    %1021 = vsyncpa %s1020, 1

</llo_original>
